<compile_context>
chip_gen: v5e
topology: v5e:2x2
jax: 0.10.0
libtpu: 0.0.40
codegen_flags: <defaults>
</compile_context>

<pallas_src>
import functools

import jax
import jax.numpy as jnp
from jax.experimental import pallas as pl
from jax.experimental.pallas import tpu as pltpu

LN_EPS = 1e-5


def _normalize(h):
    """Plain LayerNorm (no affine - folded into the next matmul), one-pass f32 statistics."""
    mu = jnp.mean(h, axis=-1, keepdims=True)
    ex2 = jnp.mean(h * h, axis=-1, keepdims=True)
    var = ex2 - mu * mu
    return (h - mu) * jax.lax.rsqrt(var + LN_EPS)


def patch_embed_kernel(x_ref, w1_ref, b1_ref, w2_ref, b2_ref, wc_ref, bc_ref, o_ref):
    # Linear 1 (bf16 MXU, f32 accumulation) + tanh-GELU (EUP) + plain LayerNorm.
    h = jnp.dot(x_ref[...], w1_ref[...], preferred_element_type=jnp.float32) + b1_ref[...]
    h = jax.nn.gelu(h, approximate=True)
    # Dropout is identity in eval mode.
    h = _normalize(h)

    # Linear 2 (LN1 gamma/beta already folded into w2/b2) + tanh-GELU + plain LayerNorm.
    h = jnp.dot(h.astype(jnp.bfloat16), w2_ref[...], preferred_element_type=jnp.float32) + b2_ref[...]
    h = jax.nn.gelu(h, approximate=True)
    h = _normalize(h)

    # 1x1 conv == per-token projection (LN2 gamma/beta folded in, N padded to 128 lanes).
    out = jnp.dot(h.astype(jnp.bfloat16), wc_ref[...], preferred_element_type=jnp.float32) + bc_ref[...]
    o_ref[...] = out.astype(o_ref.dtype)


def _prepare_params(params, out_pad):
    """Fold the LayerNorm affines into the next matmul; cast weights to bf16; pad conv N."""
    w1t, b1, g1, be1, w2t, b2, g2, be2, wct, bc = [jnp.asarray(p, jnp.float32) for p in params]
    g1 = g1.reshape(-1)
    be1 = be1.reshape(-1)
    g2 = g2.reshape(-1)
    be2 = be2.reshape(-1)

    # LN1 affine folded into Linear-2:  (z*g1 + be1) @ W2 + b2  ==  z @ (g1[:,None]*W2) + (be1@W2 + b2)
    w2f = g1[:, None] * w2t
    b2f = (be1 @ w2t + b2.reshape(-1)).reshape(1, -1)
    # LN2 affine folded into the 1x1 conv.
    wcf = g2[:, None] * wct
    bcf = (be2 @ wct + bc.reshape(-1)).reshape(1, -1)

    out_dim = wct.shape[1]
    if out_pad > out_dim:
        wcf = jnp.pad(wcf, ((0, 0), (0, out_pad - out_dim)))
        bcf = jnp.pad(bcf, ((0, 0), (0, out_pad - out_dim)))

    return (w1t.astype(jnp.bfloat16), b1.reshape(1, -1),
            w2f.astype(jnp.bfloat16), b2f,
            wcf.astype(jnp.bfloat16), bcf)


def patch_embedding_proj(x, params, *, upsample_size=4, token_tile=None):
    """x: (B, 256, in_dim) float32.  Returns (B, out_dim, 16*up, 16*up) (NCHW)."""
    B, S, in_dim = x.shape
    assert S == 256, "module hard-codes a 16x16 token grid"
    hidden = params[0].shape[1]
    out_dim = params[8].shape[1]
    out_pad = ((out_dim + 127) // 128) * 128          # lane-dense output (unmasked stores)

    w1, b1, w2, b2, wc, bc = _prepare_params(params, out_pad)

    n_tok = B * S
    if token_tile is None:
        # >= 2 grid steps (v7x megacore), larger tiles for larger B to amortize step overhead.
        token_tile = 512 if n_tok >= 1024 else max(128, n_tok // 2)
    token_tile = min(token_tile, n_tok)
    assert n_tok % token_tile == 0
    grid = (n_tok // token_tile,)

    tokens = x.reshape(n_tok, in_dim).astype(jnp.bfloat16)

    const = lambda shape: pl.BlockSpec(shape, lambda i: (0, 0))
    # TODO(synk): for large `hidden` on v7x (64 MiB VMEM) add pipeline_mode=pl.Buffered(1) to
    # the constant weight specs (or tile the Linear-2 K dim); irrelevant at hidden=128.

    cost = pl.CostEstimate(
        flops=2 * n_tok * (in_dim * hidden + hidden * hidden + hidden * out_pad),
        transcendentals=2 * n_tok * hidden,
        bytes_accessed=(tokens.size * 2 + (w1.size + w2.size + wc.size) * 2
                        + (b1.size + b2.size + bc.size) * 4 + n_tok * out_pad * 4),
    )

    out_tokens = pl.pallas_call(
        patch_embed_kernel,
        out_shape=jax.ShapeDtypeStruct((n_tok, out_pad), jnp.float32),
        grid_spec=pltpu.PrefetchScalarGridSpec(
            num_scalar_prefetch=0,
            grid=grid,
            in_specs=[
                pl.BlockSpec((token_tile, in_dim), lambda i: (i, 0)),  # x tokens (bf16)
                const((in_dim, hidden)),   # W1^T (bf16)
                const((1, hidden)),        # b1 (f32)
                const((hidden, hidden)),   # W2^T folded with LN1 affine (bf16)
                const((1, hidden)),        # b2 folded (f32)
                const((hidden, out_pad)),  # conv weight^T folded with LN2 affine, padded (bf16)
                const((1, out_pad)),       # conv bias folded, padded (f32)
            ],
            out_specs=pl.BlockSpec((token_tile, out_pad), lambda i: (i, 0)),
        ),
        compiler_params=pltpu.CompilerParams(dimension_semantics=("parallel",)),
        cost_estimate=cost,
    )(tokens, w1, b1, w2, b2, wc, bc)

    # token index t = h*16 + w  <=>  transpose(2,1).view(B, C, 16, 16)
    y = out_tokens[:, :out_dim].reshape(B, 16, 16, out_dim)
    y = jnp.transpose(y, (0, 3, 1, 2))                     # NCHW while still small
    # nearest-neighbour x`up` upsample: single broadcast materialization (one HBM pass).
    up = upsample_size
    y = jnp.broadcast_to(y[:, :, :, None, :, None], (B, out_dim, 16, up, 16, up))
    return y.reshape(B, out_dim, 16 * up, 16 * up)


def _reference(x, params, upsample_size=4):
    """Pure-JAX f32 reference mirroring the PyTorch forward exactly (eval mode, erf GELU)."""
    w1t, b1, g1, be1, w2t, b2, g2, be2, wct, bc = params

    def ln(h, g, b):
        mu = jnp.mean(h, axis=-1, keepdims=True)
        var = jnp.mean((h - mu) ** 2, axis=-1, keepdims=True)
        return (h - mu) * jax.lax.rsqrt(var + LN_EPS) * g + b

    h = jax.nn.gelu(x @ w1t + b1, approximate=False)
    h = ln(h, g1, be1)
    h = jax.nn.gelu(h @ w2t + b2, approximate=False)
    h = ln(h, g2, be2)
    B = x.shape[0]
    hidden = w1t.shape[1]
    img = jnp.transpose(h, (0, 2, 1)).reshape(B, hidden, 16, 16)
    img = jnp.repeat(jnp.repeat(img, upsample_size, axis=2), upsample_size, axis=3)
    out = jnp.einsum('bchw,co->bohw', img, wct) + bc.reshape(1, -1, 1, 1)
    return out


if __name__ == "__main__":
    # Small but module-consistent sizes (seq length must be 16*16 = 256).
    B, S = 2, 256
    IN_DIM, HIDDEN, OUT_DIM, UP = 64, 128, 64, 4

    key = jax.random.PRNGKey(0)
    ks = jax.random.split(key, 12)

    x = jax.random.normal(ks[0], (B, S, IN_DIM), dtype=jnp.float32)

    # Parameters (PyTorch shapes, pre-transposed for the kernel). Non-trivial LN affines so
    # the gamma/beta -> next-matmul folding is actually exercised.
    w1t = jax.random.normal(ks[1], (IN_DIM, HIDDEN), dtype=jnp.float32) * 0.05
    b1 = jax.random.normal(ks[2], (1, HIDDEN), dtype=jnp.float32) * 0.02
    g1 = 1.0 + 0.1 * jax.random.normal(ks[3], (1, HIDDEN), dtype=jnp.float32)
    be1 = 0.05 * jax.random.normal(ks[4], (1, HIDDEN), dtype=jnp.float32)
    w2t = jax.random.normal(ks[5], (HIDDEN, HIDDEN), dtype=jnp.float32) * 0.05
    b2 = jax.random.normal(ks[6], (1, HIDDEN), dtype=jnp.float32) * 0.02
    g2 = 1.0 + 0.1 * jax.random.normal(ks[7], (1, HIDDEN), dtype=jnp.float32)
    be2 = 0.05 * jax.random.normal(ks[8], (1, HIDDEN), dtype=jnp.float32)
    wct = jax.random.normal(ks[9], (HIDDEN, OUT_DIM), dtype=jnp.float32) * 0.05
    bc = jax.random.normal(ks[10], (1, OUT_DIM), dtype=jnp.float32) * 0.02

    params = (w1t, b1, g1, be1, w2t, b2, g2, be2, wct, bc)

    fn = jax.jit(functools.partial(patch_embedding_proj, upsample_size=UP))
    out = fn(x, params)
    out = jax.block_until_ready(out)

    assert out.shape == (B, OUT_DIM, 16 * UP, 16 * UP), out.shape

    ref = jax.block_until_ready(_reference(x, params, UP))
    max_err = float(jnp.max(jnp.abs(out - ref)))
    mean_err = float(jnp.mean(jnp.abs(out - ref)))
    # Tolerance accounts for bf16 matmul inputs + tanh-GELU vs the exact-erf f32 reference
    # (two LayerNorms amplify absolute error); gross bugs would be O(0.1-1).
    assert max_err < 5e-2, f"max mismatch vs reference: {max_err}"
    assert mean_err < 1e-2, f"mean mismatch vs reference: {mean_err}"

    print("KERNEL_OK")
</pallas_src>

<mosaic_0001>
module attributes {stable_mosaic.version = 11 : i64} {
  func.func @patch_embed_kernel(%arg0: i32, %arg1: memref<256x64xbf16, #tpu.memory_space<vmem>>, %arg2: memref<64x128xbf16, #tpu.memory_space<vmem>>, %arg3: memref<1x128xf32, #tpu.memory_space<vmem>>, %arg4: memref<128x128xbf16, #tpu.memory_space<vmem>>, %arg5: memref<1x128xf32, #tpu.memory_space<vmem>>, %arg6: memref<128x128xbf16, #tpu.memory_space<vmem>>, %arg7: memref<1x128xf32, #tpu.memory_space<vmem>>, %arg8: memref<256x128xf32, #tpu.memory_space<vmem>>) attributes {dimension_semantics = [#tpu.dimension_semantics<parallel>], iteration_bounds = array<i64: 2>, scalar_prefetch = 0 : i64, scratch_operands = 0 : i64, tpu.core_type = #tpu.core_type<tc>, window_params = [{transform_indices = @transform_0, window_bounds = array<i64: 256, 64>}, {pipeline_mode = #tpu.pipeline_mode<synchronous>, transform_indices = @transform_1, window_bounds = array<i64: 64, 128>}, {pipeline_mode = #tpu.pipeline_mode<synchronous>, transform_indices = @transform_2, window_bounds = array<i64: 1, 128>}, {pipeline_mode = #tpu.pipeline_mode<synchronous>, transform_indices = @transform_3, window_bounds = array<i64: 128, 128>}, {pipeline_mode = #tpu.pipeline_mode<synchronous>, transform_indices = @transform_4, window_bounds = array<i64: 1, 128>}, {pipeline_mode = #tpu.pipeline_mode<synchronous>, transform_indices = @transform_5, window_bounds = array<i64: 128, 128>}, {pipeline_mode = #tpu.pipeline_mode<synchronous>, transform_indices = @transform_6, window_bounds = array<i64: 1, 128>}, {transform_indices = @transform_7, window_bounds = array<i64: 256, 128>}]} {
    %c0 = arith.constant 0 : index
    %c0_0 = arith.constant 0 : index
    %0 = vector.load %arg1[%c0, %c0_0] : memref<256x64xbf16, #tpu.memory_space<vmem>>, vector<256x64xbf16>
    %c0_1 = arith.constant 0 : index
    %c0_2 = arith.constant 0 : index
    %1 = vector.load %arg2[%c0_1, %c0_2] : memref<64x128xbf16, #tpu.memory_space<vmem>>, vector<64x128xbf16>
    %cst = arith.constant dense<0.000000e+00> : vector<256x128xf32>
    %2 = tpu.matmul %0, %1, %cst {dimension_numbers = #tpu.dot_dimension_numbers<[1], [0], [0], [1], [0, 0, 1, 1], [], []>} : vector<256x64xbf16>, vector<64x128xbf16>, vector<256x128xf32> -> vector<256x128xf32>
    %c0_3 = arith.constant 0 : index
    %c0_4 = arith.constant 0 : index
    %3 = vector.load %arg3[%c0_3, %c0_4] : memref<1x128xf32, #tpu.memory_space<vmem>>, vector<1x128xf32>
    %4 = vector.broadcast %3 : vector<1x128xf32> to vector<256x128xf32>
    %5 = arith.addf %2, %4 : vector<256x128xf32>
    %6 = arith.mulf %5, %5 : vector<256x128xf32>
    %7 = arith.mulf %5, %6 : vector<256x128xf32>
    %cst_5 = arith.constant 4.471500e-02 : f32
    %8 = vector.broadcast %cst_5 : f32 to vector<256x128xf32>
    %9 = arith.mulf %8, %7 : vector<256x128xf32>
    %10 = arith.addf %5, %9 : vector<256x128xf32>
    %cst_6 = arith.constant 0.797884583 : f32
    %11 = vector.broadcast %cst_6 : f32 to vector<256x128xf32>
    %12 = arith.mulf %11, %10 : vector<256x128xf32>
    %13 = math.tanh %12 : vector<256x128xf32>
    %cst_7 = arith.constant 1.000000e+00 : f32
    %14 = vector.broadcast %cst_7 : f32 to vector<256x128xf32>
    %15 = arith.addf %14, %13 : vector<256x128xf32>
    %cst_8 = arith.constant 5.000000e-01 : f32
    %16 = vector.broadcast %cst_8 : f32 to vector<256x128xf32>
    %17 = arith.mulf %16, %15 : vector<256x128xf32>
    %18 = arith.mulf %5, %17 : vector<256x128xf32>
    %cst_9 = arith.constant dense<0.000000e+00> : vector<256xf32>
    %19 = vector.multi_reduction <add>, %18, %cst_9 [1] : vector<256x128xf32> to vector<256xf32>
    %20 = vector.shape_cast %19 : vector<256xf32> to vector<256x1xf32>
    %cst_10 = arith.constant 1.280000e+02 : f32
    %21 = vector.broadcast %cst_10 : f32 to vector<256x1xf32>
    %22 = arith.divf %20, %21 : vector<256x1xf32>
    %23 = arith.mulf %18, %18 : vector<256x128xf32>
    %cst_11 = arith.constant dense<0.000000e+00> : vector<256xf32>
    %24 = vector.multi_reduction <add>, %23, %cst_11 [1] : vector<256x128xf32> to vector<256xf32>
    %25 = vector.shape_cast %24 : vector<256xf32> to vector<256x1xf32>
    %cst_12 = arith.constant 1.280000e+02 : f32
    %26 = vector.broadcast %cst_12 : f32 to vector<256x1xf32>
    %27 = arith.divf %25, %26 : vector<256x1xf32>
    %28 = arith.mulf %22, %22 : vector<256x1xf32>
    %29 = arith.subf %27, %28 : vector<256x1xf32>
    %30 = vector.broadcast %22 : vector<256x1xf32> to vector<256x128xf32>
    %31 = arith.subf %18, %30 : vector<256x128xf32>
    %cst_13 = arith.constant 9.99999974E-6 : f32
    %32 = vector.broadcast %cst_13 : f32 to vector<256x1xf32>
    %33 = arith.addf %29, %32 : vector<256x1xf32>
    %34 = math.rsqrt %33 : vector<256x1xf32>
    %35 = vector.broadcast %34 : vector<256x1xf32> to vector<256x128xf32>
    %36 = arith.mulf %31, %35 : vector<256x128xf32>
    %37 = arith.truncf %36 : vector<256x128xf32> to vector<256x128xbf16>
    %c0_14 = arith.constant 0 : index
    %c0_15 = arith.constant 0 : index
    %38 = vector.load %arg4[%c0_14, %c0_15] : memref<128x128xbf16, #tpu.memory_space<vmem>>, vector<128x128xbf16>
    %cst_16 = arith.constant dense<0.000000e+00> : vector<256x128xf32>
    %39 = tpu.matmul %37, %38, %cst_16 {dimension_numbers = #tpu.dot_dimension_numbers<[1], [0], [0], [1], [0, 0, 1, 1], [], []>} : vector<256x128xbf16>, vector<128x128xbf16>, vector<256x128xf32> -> vector<256x128xf32>
    %c0_17 = arith.constant 0 : index
    %c0_18 = arith.constant 0 : index
    %40 = vector.load %arg5[%c0_17, %c0_18] : memref<1x128xf32, #tpu.memory_space<vmem>>, vector<1x128xf32>
    %41 = vector.broadcast %40 : vector<1x128xf32> to vector<256x128xf32>
    %42 = arith.addf %39, %41 : vector<256x128xf32>
    %43 = arith.mulf %42, %42 : vector<256x128xf32>
    %44 = arith.mulf %42, %43 : vector<256x128xf32>
    %cst_19 = arith.constant 4.471500e-02 : f32
    %45 = vector.broadcast %cst_19 : f32 to vector<256x128xf32>
    %46 = arith.mulf %45, %44 : vector<256x128xf32>
    %47 = arith.addf %42, %46 : vector<256x128xf32>
    %cst_20 = arith.constant 0.797884583 : f32
    %48 = vector.broadcast %cst_20 : f32 to vector<256x128xf32>
    %49 = arith.mulf %48, %47 : vector<256x128xf32>
    %50 = math.tanh %49 : vector<256x128xf32>
    %cst_21 = arith.constant 1.000000e+00 : f32
    %51 = vector.broadcast %cst_21 : f32 to vector<256x128xf32>
    %52 = arith.addf %51, %50 : vector<256x128xf32>
    %cst_22 = arith.constant 5.000000e-01 : f32
    %53 = vector.broadcast %cst_22 : f32 to vector<256x128xf32>
    %54 = arith.mulf %53, %52 : vector<256x128xf32>
    %55 = arith.mulf %42, %54 : vector<256x128xf32>
    %cst_23 = arith.constant dense<0.000000e+00> : vector<256xf32>
    %56 = vector.multi_reduction <add>, %55, %cst_23 [1] : vector<256x128xf32> to vector<256xf32>
    %57 = vector.shape_cast %56 : vector<256xf32> to vector<256x1xf32>
    %cst_24 = arith.constant 1.280000e+02 : f32
    %58 = vector.broadcast %cst_24 : f32 to vector<256x1xf32>
    %59 = arith.divf %57, %58 : vector<256x1xf32>
    %60 = arith.mulf %55, %55 : vector<256x128xf32>
    %cst_25 = arith.constant dense<0.000000e+00> : vector<256xf32>
    %61 = vector.multi_reduction <add>, %60, %cst_25 [1] : vector<256x128xf32> to vector<256xf32>
    %62 = vector.shape_cast %61 : vector<256xf32> to vector<256x1xf32>
    %cst_26 = arith.constant 1.280000e+02 : f32
    %63 = vector.broadcast %cst_26 : f32 to vector<256x1xf32>
    %64 = arith.divf %62, %63 : vector<256x1xf32>
    %65 = arith.mulf %59, %59 : vector<256x1xf32>
    %66 = arith.subf %64, %65 : vector<256x1xf32>
    %67 = vector.broadcast %59 : vector<256x1xf32> to vector<256x128xf32>
    %68 = arith.subf %55, %67 : vector<256x128xf32>
    %cst_27 = arith.constant 9.99999974E-6 : f32
    %69 = vector.broadcast %cst_27 : f32 to vector<256x1xf32>
    %70 = arith.addf %66, %69 : vector<256x1xf32>
    %71 = math.rsqrt %70 : vector<256x1xf32>
    %72 = vector.broadcast %71 : vector<256x1xf32> to vector<256x128xf32>
    %73 = arith.mulf %68, %72 : vector<256x128xf32>
    %74 = arith.truncf %73 : vector<256x128xf32> to vector<256x128xbf16>
    %c0_28 = arith.constant 0 : index
    %c0_29 = arith.constant 0 : index
    %75 = vector.load %arg6[%c0_28, %c0_29] : memref<128x128xbf16, #tpu.memory_space<vmem>>, vector<128x128xbf16>
    %cst_30 = arith.constant dense<0.000000e+00> : vector<256x128xf32>
    %76 = tpu.matmul %74, %75, %cst_30 {dimension_numbers = #tpu.dot_dimension_numbers<[1], [0], [0], [1], [0, 0, 1, 1], [], []>} : vector<256x128xbf16>, vector<128x128xbf16>, vector<256x128xf32> -> vector<256x128xf32>
    %c0_31 = arith.constant 0 : index
    %c0_32 = arith.constant 0 : index
    %77 = vector.load %arg7[%c0_31, %c0_32] : memref<1x128xf32, #tpu.memory_space<vmem>>, vector<1x128xf32>
    %78 = vector.broadcast %77 : vector<1x128xf32> to vector<256x128xf32>
    %79 = arith.addf %76, %78 : vector<256x128xf32>
    %c0_33 = arith.constant 0 : index
    %c0_34 = arith.constant 0 : index
    %80 = vector.load %arg8[%c0_33, %c0_34] : memref<256x128xf32, #tpu.memory_space<vmem>>, vector<256x128xf32>
    tpu.vector_store %arg8[%c0_33, %c0_34], %79 {strides = array<i32>} : memref<256x128xf32, #tpu.memory_space<vmem>>, vector<256x128xf32>,
    return
  }
  func.func @transform_0(%arg0: i32) -> (i32, i32) {
    %c0_i32 = arith.constant 0 : i32
    %c0_i32_0 = arith.constant 0 : i32
    return %arg0, %c0_i32 : i32, i32
  }
  func.func @transform_1(%arg0: i32) -> (i32, i32) {
    %c0_i32 = arith.constant 0 : i32
    %c0_i32_0 = arith.constant 0 : i32
    %c0_i32_1 = arith.constant 0 : i32
    return %c0_i32, %c0_i32_0 : i32, i32
  }
  func.func @transform_2(%arg0: i32) -> (i32, i32) {
    %c0_i32 = arith.constant 0 : i32
    %c0_i32_0 = arith.constant 0 : i32
    %c0_i32_1 = arith.constant 0 : i32
    return %c0_i32, %c0_i32_0 : i32, i32
  }
  func.func @transform_3(%arg0: i32) -> (i32, i32) {
    %c0_i32 = arith.constant 0 : i32
    %c0_i32_0 = arith.constant 0 : i32
    %c0_i32_1 = arith.constant 0 : i32
    return %c0_i32, %c0_i32_0 : i32, i32
  }
  func.func @transform_4(%arg0: i32) -> (i32, i32) {
    %c0_i32 = arith.constant 0 : i32
    %c0_i32_0 = arith.constant 0 : i32
    %c0_i32_1 = arith.constant 0 : i32
    return %c0_i32, %c0_i32_0 : i32, i32
  }
  func.func @transform_5(%arg0: i32) -> (i32, i32) {
    %c0_i32 = arith.constant 0 : i32
    %c0_i32_0 = arith.constant 0 : i32
    %c0_i32_1 = arith.constant 0 : i32
    return %c0_i32, %c0_i32_0 : i32, i32
  }
  func.func @transform_6(%arg0: i32) -> (i32, i32) {
    %c0_i32 = arith.constant 0 : i32
    %c0_i32_0 = arith.constant 0 : i32
    %c0_i32_1 = arith.constant 0 : i32
    return %c0_i32, %c0_i32_0 : i32, i32
  }
  func.func @transform_7(%arg0: i32) -> (i32, i32) {
    %c0_i32 = arith.constant 0 : i32
    %c0_i32_0 = arith.constant 0 : i32
    return %arg0, %c0_i32 : i32, i32
  }
}

</mosaic_0001>

<llo_original>
// kernel: patch_embedding_proj.1
$region0: #{patch_embedding_proj.1}
  #allocation0 [shape = 'u32[]', space=smem, size = 0x4, offset = 0x4, fixed_abs, tag = 'smem constant byte address 0x4 - core index']
  #allocation1 [shape = 'u32[72,128]{1,0:T(1,128)}', space=vmem, size = 0x9000, scoped, tag = 'internal scratch']
  %s0 = inlined_call_operand.vmem [shape: bf16[512,64], index: 0, kind: input, shape index: {}]
  %s1 = inlined_call_operand.vmem [shape: bf16[64,128], index: 1, kind: input, shape index: {}]
  %s2 = inlined_call_operand.hbm [shape: f32[1,128], index: 2, kind: input, shape index: {}]
  %s3 = inlined_call_operand.vmem [shape: bf16[128,128], index: 3, kind: input, shape index: {}]
  %s4 = inlined_call_operand.vmem [shape: f32[1,128], index: 4, kind: input, shape index: {}]
  %s5 = inlined_call_operand.vmem [shape: bf16[128,128], index: 5, kind: input, shape index: {}]
  %s6 = inlined_call_operand.vmem [shape: f32[1,128], index: 6, kind: input, shape index: {}]
  %s7 = inlined_call_operand.vmem [shape: f32[512,128], index: 7, kind: output, shape index: {}]
  %s8 = sld [smem:[#allocation0]]
  $region65: #{patch_embedding_proj.1} parent=0
    _
  %s10 = ssub.s32 1, %s8
  %s11 = scalar_select 0, %s10, %s8
  $region1: #{patch_embedding_proj.1} parent=0
    #allocation2 [shape = 'u8[512]{0}', space=vmem, size = 0x400, scoped, tag = 'input window, operand 2, single buffered']
    #allocation3 [shape = 's32[2]{0}', space=sflag, size = 0x8, scoped, tag = 'scoped memory for patch_embedding_proj.1']
    %12 = vsyncpa [#allocation3], 0
    loop: start=0, step=1, limit=4
    $region2: #{patch_embedding_proj.1} parent=1 // loop_pre_header
      _
    $region3: #{patch_embedding_proj.1} parent=1 // loop_header
      %s14 = sphi 0, %s18
      %p15 = scmp.ge.s32.totalorder %s14, 4
      %s24 = sphi 0, %s26
      %s27 = sphi 0, %s24
      %s28 = sphi 0, %s27
      %s44 = sphi 0, %s28
      %s48 = sphi 0, %s48
      %s50 = sphi 0, %s48
      %s51 = sphi 0, %s50
      %s65 = sphi 0, %s51
      %s69 = sphi 0, %s69
      %s71 = sphi 0, %s69
      %s72 = sphi 0, %s71
      %s86 = sphi 0, %s72
      %s90 = sphi 0, %s90
      %s92 = sphi 0, %s90
      %s93 = sphi 0, %s92
      %s107 = sphi 0, %s93
      %s111 = sphi 0, %s111
      %s113 = sphi 0, %s111
      %s114 = sphi 0, %s113
      %s128 = sphi 0, %s114
      %s132 = sphi 0, %s132
      %s134 = sphi 0, %s132
      %s135 = sphi 0, %s134
      %s149 = sphi 0, %s135
      %s153 = sphi 0, %s153
      %s155 = sphi 0, %s153
      %s156 = sphi 0, %s155
      %s170 = sphi 0, %s156
      %s176 = sphi 0, %s178
      %s179 = sphi 0, %s176
      %s180 = sphi 0, %s179
      %s196 = sphi 0, %s180
    $region4: #{patch_embedding_proj.1} parent=1 // loop_header_branch
      %17 = sbr.rel (%p15) target = $region8
    $region5: #{patch_embedding_proj.1} parent=1 // loop_body
      %s19 = ssub.s32 %s14, 1
      %s20 = ssub.s32 %s14, 2
      %s21 = sadd.s32 %s14, 1
      %s22 = ssub.s32 %s14, %s21
      %p23 = scmp.eq.s32.totalorder %s22, 0
      %s25 = sadd.s32 %s24, 1
      %s26 = scalar_select %p23, %s24, %s25
      %p29 = pneg %p23
      %p30 = scmp.eq.s32.totalorder %s14, 1
      %p31 = por %p29, %p30
      %p32 = scmp.ne.s32.totalorder %s24, %s27
      %p33 = scmp.eq.s32.totalorder %s14, 0
      %p34 = por %p32, %p33
      %p35 = scmp.ne.s32.totalorder %s24, %s27
      %p36 = scmp.eq.s32.totalorder %s19, 1
      %p37 = por %p35, %p36
      %p38 = scmp.ne.s32.totalorder %s27, %s28
      %p39 = scmp.eq.s32.totalorder %s19, 0
      %p40 = por %p38, %p39
      %p41 = scmp.ne.s32.totalorder %s27, %s28
      %p42 = scmp.eq.s32.totalorder %s20, 1
      %p43 = por %p41, %p42
      %p45 = scmp.ne.s32.totalorder %s28, %s44
      %p46 = scmp.eq.s32.totalorder %s20, 0
      %p47 = por %p45, %p46
      %s49 = sadd.s32 %s48, 1
      %p52 = scmp.eq.s32.totalorder %s14, 1
      %p53 = scmp.ne.s32.totalorder %s48, %s50
      %p54 = scmp.eq.s32.totalorder %s14, 0
      %p55 = por %p53, %p54
      %p56 = scmp.ne.s32.totalorder %s48, %s50
      %p57 = scmp.eq.s32.totalorder %s19, 1
      %p58 = por %p56, %p57
      %p59 = scmp.ne.s32.totalorder %s50, %s51
      %p60 = scmp.eq.s32.totalorder %s19, 0
      %p61 = por %p59, %p60
      %p62 = scmp.ne.s32.totalorder %s50, %s51
      %p63 = scmp.eq.s32.totalorder %s20, 1
      %p64 = por %p62, %p63
      %p66 = scmp.ne.s32.totalorder %s51, %s65
      %p67 = scmp.eq.s32.totalorder %s20, 0
      %p68 = por %p66, %p67
      %s70 = sadd.s32 %s69, 1
      %p73 = scmp.eq.s32.totalorder %s14, 1
      %p74 = scmp.ne.s32.totalorder %s69, %s71
      %p75 = scmp.eq.s32.totalorder %s14, 0
      %p76 = por %p74, %p75
      %p77 = scmp.ne.s32.totalorder %s69, %s71
      %p78 = scmp.eq.s32.totalorder %s19, 1
      %p79 = por %p77, %p78
      %p80 = scmp.ne.s32.totalorder %s71, %s72
      %p81 = scmp.eq.s32.totalorder %s19, 0
      %p82 = por %p80, %p81
      %p83 = scmp.ne.s32.totalorder %s71, %s72
      %p84 = scmp.eq.s32.totalorder %s20, 1
      %p85 = por %p83, %p84
      %p87 = scmp.ne.s32.totalorder %s72, %s86
      %p88 = scmp.eq.s32.totalorder %s20, 0
      %p89 = por %p87, %p88
      %s91 = sadd.s32 %s90, 1
      %p94 = scmp.eq.s32.totalorder %s14, 1
      %p95 = scmp.ne.s32.totalorder %s90, %s92
      %p96 = scmp.eq.s32.totalorder %s14, 0
      %p97 = por %p95, %p96
      %p98 = scmp.ne.s32.totalorder %s90, %s92
      %p99 = scmp.eq.s32.totalorder %s19, 1
      %p100 = por %p98, %p99
      %p101 = scmp.ne.s32.totalorder %s92, %s93
      %p102 = scmp.eq.s32.totalorder %s19, 0
      %p103 = por %p101, %p102
      %p104 = scmp.ne.s32.totalorder %s92, %s93
      %p105 = scmp.eq.s32.totalorder %s20, 1
      %p106 = por %p104, %p105
      %p108 = scmp.ne.s32.totalorder %s93, %s107
      %p109 = scmp.eq.s32.totalorder %s20, 0
      %p110 = por %p108, %p109
      %s112 = sadd.s32 %s111, 1
      %p115 = scmp.eq.s32.totalorder %s14, 1
      %p116 = scmp.ne.s32.totalorder %s111, %s113
      %p117 = scmp.eq.s32.totalorder %s14, 0
      %p118 = por %p116, %p117
      %p119 = scmp.ne.s32.totalorder %s111, %s113
      %p120 = scmp.eq.s32.totalorder %s19, 1
      %p121 = por %p119, %p120
      %p122 = scmp.ne.s32.totalorder %s113, %s114
      %p123 = scmp.eq.s32.totalorder %s19, 0
      %p124 = por %p122, %p123
      %p125 = scmp.ne.s32.totalorder %s113, %s114
      %p126 = scmp.eq.s32.totalorder %s20, 1
      %p127 = por %p125, %p126
      %p129 = scmp.ne.s32.totalorder %s114, %s128
      %p130 = scmp.eq.s32.totalorder %s20, 0
      %p131 = por %p129, %p130
      %s133 = sadd.s32 %s132, 1
      %p136 = scmp.eq.s32.totalorder %s14, 1
      %p137 = scmp.ne.s32.totalorder %s132, %s134
      %p138 = scmp.eq.s32.totalorder %s14, 0
      %p139 = por %p137, %p138
      %p140 = scmp.ne.s32.totalorder %s132, %s134
      %p141 = scmp.eq.s32.totalorder %s19, 1
      %p142 = por %p140, %p141
      %p143 = scmp.ne.s32.totalorder %s134, %s135
      %p144 = scmp.eq.s32.totalorder %s19, 0
      %p145 = por %p143, %p144
      %p146 = scmp.ne.s32.totalorder %s134, %s135
      %p147 = scmp.eq.s32.totalorder %s20, 1
      %p148 = por %p146, %p147
      %p150 = scmp.ne.s32.totalorder %s135, %s149
      %p151 = scmp.eq.s32.totalorder %s20, 0
      %p152 = por %p150, %p151
      %s154 = sadd.s32 %s153, 1
      %p157 = scmp.eq.s32.totalorder %s14, 1
      %p158 = scmp.ne.s32.totalorder %s153, %s155
      %p159 = scmp.eq.s32.totalorder %s14, 0
      %p160 = por %p158, %p159
      %p161 = scmp.ne.s32.totalorder %s153, %s155
      %p162 = scmp.eq.s32.totalorder %s19, 1
      %p163 = por %p161, %p162
      %p164 = scmp.ne.s32.totalorder %s155, %s156
      %p165 = scmp.eq.s32.totalorder %s19, 0
      %p166 = por %p164, %p165
      %p167 = scmp.ne.s32.totalorder %s155, %s156
      %p168 = scmp.eq.s32.totalorder %s20, 1
      %p169 = por %p167, %p168
      %p171 = scmp.ne.s32.totalorder %s156, %s170
      %p172 = scmp.eq.s32.totalorder %s20, 0
      %p173 = por %p171, %p172
      %s174 = ssub.s32 %s14, %s21
      %p175 = scmp.eq.s32.totalorder %s174, 0
      %s177 = sadd.s32 %s176, 1
      %s178 = scalar_select %p175, %s176, %s177
      %p181 = pneg %p175
      %p182 = scmp.eq.s32.totalorder %s14, 1
      %p183 = por %p181, %p182
      %p184 = scmp.ne.s32.totalorder %s176, %s179
      %p185 = scmp.eq.s32.totalorder %s14, 0
      %p186 = por %p184, %p185
      %p187 = scmp.ne.s32.totalorder %s176, %s179
      %p188 = scmp.eq.s32.totalorder %s19, 1
      %p189 = por %p187, %p188
      %p190 = scmp.ne.s32.totalorder %s179, %s180
      %p191 = scmp.eq.s32.totalorder %s19, 0
      %p192 = por %p190, %p191
      %p193 = scmp.ne.s32.totalorder %s179, %s180
      %p194 = scmp.eq.s32.totalorder %s20, 1
      %p195 = por %p193, %p194
      %p197 = scmp.ne.s32.totalorder %s180, %s196
      %p198 = scmp.eq.s32.totalorder %s20, 0
      %p199 = por %p197, %p198
      %p200 = scmp.le.s32.totalorder 1, %s14
      %p201 = scmp.lt.s32.totalorder %s14, 3
      %p202 = pnand %p200, %p201
      %p203 = pneg %p202
      // Predicated region
      $region9: #{patch_embedding_proj.1} parent=5 // pred_check
        _
      $region10: #{patch_embedding_proj.1} parent=5 // pred_check_branch
        %205 = sbr.rel (%p202) target = $region12
      $region11: #{patch_embedding_proj.1} parent=5 // pred_region
        %s206 = ssub.s32 %s14, 1
        // Predicated region
        $region13: #{patch_embedding_proj.1} parent=11 // pred_check
          %p207 = pneg %p61
        $region14: #{patch_embedding_proj.1} parent=11 // pred_check_branch
          %209 = sbr.rel (%p207) target = $region16
        $region15: #{patch_embedding_proj.1} parent=11 // pred_region
          _
        $region16: #{patch_embedding_proj.1} parent=11 // pred_fallthru
          _
        // Predicated region
        $region17: #{patch_embedding_proj.1} parent=11 // pred_check
          %p210 = pneg %p82
        $region18: #{patch_embedding_proj.1} parent=11 // pred_check_branch
          %212 = sbr.rel (%p210) target = $region20
        $region19: #{patch_embedding_proj.1} parent=11 // pred_region
          %214 = vsyncadd [#allocation3], 0
          %s216 = sshll.u32 %s2, 4
          %s217 = int_to_ptr.hbm [resolvable:$true] %s216
          %s218 = sshll.u32 [#allocation2], 4
          %s219 = int_to_ptr.vmem [resolvable:$true] %s218
          %221 = dma.hbm_to_vmem [thread:$0]  %s217, 16, %s219, [#allocation3]
        $region20: #{patch_embedding_proj.1} parent=11 // pred_fallthru
          _
        // Predicated region
        $region21: #{patch_embedding_proj.1} parent=11 // pred_check
          %p222 = pneg %p103
        $region22: #{patch_embedding_proj.1} parent=11 // pred_check_branch
          %224 = sbr.rel (%p222) target = $region24
        $region23: #{patch_embedding_proj.1} parent=11 // pred_region
          _
        $region24: #{patch_embedding_proj.1} parent=11 // pred_fallthru
          _
        // Predicated region
        $region25: #{patch_embedding_proj.1} parent=11 // pred_check
          %p225 = pneg %p124
        $region26: #{patch_embedding_proj.1} parent=11 // pred_check_branch
          %227 = sbr.rel (%p225) target = $region28
        $region27: #{patch_embedding_proj.1} parent=11 // pred_region
          _
        $region28: #{patch_embedding_proj.1} parent=11 // pred_fallthru
          _
        // Predicated region
        $region29: #{patch_embedding_proj.1} parent=11 // pred_check
          %p228 = pneg %p145
        $region30: #{patch_embedding_proj.1} parent=11 // pred_check_branch
          %230 = sbr.rel (%p228) target = $region32
        $region31: #{patch_embedding_proj.1} parent=11 // pred_region
          _
        $region32: #{patch_embedding_proj.1} parent=11 // pred_fallthru
          _
        // Predicated region
        $region33: #{patch_embedding_proj.1} parent=11 // pred_check
          %p231 = pneg %p166
        $region34: #{patch_embedding_proj.1} parent=11 // pred_check_branch
          %233 = sbr.rel (%p231) target = $region36
        $region35: #{patch_embedding_proj.1} parent=11 // pred_region
          _
        $region36: #{patch_embedding_proj.1} parent=11 // pred_fallthru
          _
      $region12: #{patch_embedding_proj.1} parent=5 // pred_fallthru
        _
      %p234 = scmp.lt.s32.totalorder %s14, 2
      // Predicated region
      $region37: #{patch_embedding_proj.1} parent=5 // pred_check
        %p235 = pneg %p234
      $region38: #{patch_embedding_proj.1} parent=5 // pred_check_branch
        %237 = sbr.rel (%p235) target = $region40
      $region39: #{patch_embedding_proj.1} parent=5 // pred_region
        // Predicated region
        $region41: #{patch_embedding_proj.1} parent=39 // pred_check
          %p238 = pneg %p34
        $region42: #{patch_embedding_proj.1} parent=39 // pred_check_branch
          %240 = sbr.rel (%p238) target = $region44
        $region43: #{patch_embedding_proj.1} parent=39 // pred_region
          %s241 = smul.u32 32, %s14
          %p242 = scmp.lt.s32.totalorder %s241, 63
          %s243 = scalar_select %p242, %s241, 63
          %s244 = smul.addr %s243, 4
          %s245 = scalar_lea.vmem %s0, %s244
          %s246 = smul.u32 32, %s14
        $region44: #{patch_embedding_proj.1} parent=39 // pred_fallthru
          _
      $region40: #{patch_embedding_proj.1} parent=5 // pred_fallthru
        _
      %p247 = scmp.le.s32.totalorder 1, %s14
      %p248 = scmp.lt.s32.totalorder %s14, 3
      %p249 = pnand %p247, %p248
      %p250 = pneg %p249
      // Predicated region
      $region45: #{patch_embedding_proj.1} parent=5 // pred_check
        _
      $region46: #{patch_embedding_proj.1} parent=5 // pred_check_branch
        %252 = sbr.rel (%p249) target = $region48
      $region47: #{patch_embedding_proj.1} parent=5 // pred_region
        %s253 = ssub.s32 %s14, 1
        // Predicated region
        $region49: #{patch_embedding_proj.1} parent=47 // pred_check
          %p254 = pneg %p82
        $region50: #{patch_embedding_proj.1} parent=47 // pred_check_branch
          %256 = sbr.rel (%p254) target = $region52
        $region51: #{patch_embedding_proj.1} parent=47 // pred_region
          %258 = dma.done [#allocation3], 16
        $region52: #{patch_embedding_proj.1} parent=47 // pred_fallthru
          _
        %s259 = smul.u32 32, %s19
        %p260 = scmp.lt.s32.totalorder %s259, 63
        %s261 = scalar_select %p260, %s259, 63
        %s262 = smul.addr %s261, 4
        %s263 = scalar_lea.vmem %s0, %s262
        %p264 = pneg %p40
        %p265 = pneg %p37
        %p266 = pneg %p61
        %p267 = pneg %p58
        %p268 = pneg %p82
        %p269 = pneg %p79
        %p270 = pneg %p103
        %p271 = pneg %p100
        %p272 = pneg %p124
        %p273 = pneg %p121
        %p274 = pneg %p145
        %p275 = pneg %p142
        %p276 = pneg %p166
        %p277 = pneg %p163
        %p278 = pneg %p192
        %p279 = pneg %p189
        %s280 = smul.u32 32, %s19
        %p281 = scmp.lt.s32.totalorder %s280, 63
        %s282 = scalar_select %p281, %s280, 63
        %s283 = smul.addr %s282, 8
        %s284 = scalar_lea.vmem %s7, %s283
        %s285 = smul.u32 32, %s19
        %p286 = scmp.lt.s32.totalorder %s285, 63
        %s287 = scalar_select %p286, %s285, 63
        %s288 = smul.addr %s287, 4
        %s289 = scalar_lea.vmem %s0, %s288
        %s290 = smul.u32 32, %s19
        %s291 = smul.u32 32, %s19
        %p292 = scmp.lt.s32.totalorder %s291, 63
        %s293 = scalar_select %p292, %s291, 63
        %s294 = smul.addr %s293, 8
        %s295 = scalar_lea.vmem %s7, %s294
        %s296 = smul.u32 32, %s19
        %v298 = vld [vmem:[%s289] sm:$0xf]
        %v299 = vld [vmem:[%s289 + $0x4] sm:$0xf]
        %v300 = vld [vmem:[%s289 + $0x8] sm:$0xf]
        %v301 = vld [vmem:[%s289 + $0xc] sm:$0xf]
        %v302 = vld [vmem:[%s289 + $0x10] sm:$0xf]
        %v303 = vld [vmem:[%s289 + $0x14] sm:$0xf]
        %v304 = vld [vmem:[%s289 + $0x18] sm:$0xf]
        %v305 = vld [vmem:[%s289 + $0x1c] sm:$0xf]
        %v306 = vld [vmem:[%s289 + $0x20] sm:$0xf]
        %v307 = vld [vmem:[%s289 + $0x24] sm:$0xf]
        %v308 = vld [vmem:[%s289 + $0x28] sm:$0xf]
        %v309 = vld [vmem:[%s289 + $0x2c] sm:$0xf]
        %v310 = vld [vmem:[%s289 + $0x30] sm:$0xf]
        %v311 = vld [vmem:[%s289 + $0x34] sm:$0xf]
        %v312 = vld [vmem:[%s289 + $0x38] sm:$0xf]
        %v313 = vld [vmem:[%s289 + $0x3c] sm:$0xf]
        %v314 = vld [vmem:[%s289 + $0x40] sm:$0xf]
        %v315 = vld [vmem:[%s289 + $0x44] sm:$0xf]
        %v316 = vld [vmem:[%s289 + $0x48] sm:$0xf]
        %v317 = vld [vmem:[%s289 + $0x4c] sm:$0xf]
        %v318 = vld [vmem:[%s289 + $0x50] sm:$0xf]
        %v319 = vld [vmem:[%s289 + $0x54] sm:$0xf]
        %v320 = vld [vmem:[%s289 + $0x58] sm:$0xf]
        %v321 = vld [vmem:[%s289 + $0x5c] sm:$0xf]
        %v322 = vld [vmem:[%s289 + $0x60] sm:$0xf]
        %v323 = vld [vmem:[%s289 + $0x64] sm:$0xf]
        %v324 = vld [vmem:[%s289 + $0x68] sm:$0xf]
        %v325 = vld [vmem:[%s289 + $0x6c] sm:$0xf]
        %v326 = vld [vmem:[%s289 + $0x70] sm:$0xf]
        %v327 = vld [vmem:[%s289 + $0x74] sm:$0xf]
        %v328 = vld [vmem:[%s289 + $0x78] sm:$0xf]
        %v329 = vld [vmem:[%s289 + $0x7c] sm:$0xf]
        %v330 = vld [vmem:[%s1] sm:$0xf]
        %v331 = vld [vmem:[%s1 + $0x4] sm:$0xf]
        %v332 = vld [vmem:[%s1 + $0x8] sm:$0xf]
        %v333 = vld [vmem:[%s1 + $0xc] sm:$0xf]
        %v334 = vld [vmem:[%s1 + $0x10] sm:$0xf]
        %v335 = vld [vmem:[%s1 + $0x14] sm:$0xf]
        %v336 = vld [vmem:[%s1 + $0x18] sm:$0xf]
        %v337 = vld [vmem:[%s1 + $0x1c] sm:$0xf]
        %v338 = vld [vmem:[#allocation2] sm:$0x1]
        %v340 = vperm.slane %v338, 0
        %v374 = vunpack.c.l.b16 %v298
        %v375 = vunpack.c.l.b16 %v299
        %v376 = vunpack.c.l.b16 %v300
        %v377 = vunpack.c.l.b16 %v301
        %v378 = vunpack.c.l.b16 %v302
        %v379 = vunpack.c.l.b16 %v303
        %v380 = vunpack.c.l.b16 %v304
        %v381 = vunpack.c.l.b16 %v305
        %v382 = vunpack.c.l.b16 %v306
        %v383 = vunpack.c.l.b16 %v307
        %v384 = vunpack.c.l.b16 %v308
        %v385 = vunpack.c.l.b16 %v309
        %v386 = vunpack.c.l.b16 %v310
        %v387 = vunpack.c.l.b16 %v311
        %v388 = vunpack.c.l.b16 %v312
        %v389 = vunpack.c.l.b16 %v313
        %v390 = vunpack.c.l.b16 %v314
        %v391 = vunpack.c.l.b16 %v315
        %v392 = vunpack.c.l.b16 %v316
        %v393 = vunpack.c.l.b16 %v317
        %v394 = vunpack.c.l.b16 %v318
        %v395 = vunpack.c.l.b16 %v319
        %v396 = vunpack.c.l.b16 %v320
        %v397 = vunpack.c.l.b16 %v321
        %v398 = vunpack.c.l.b16 %v322
        %v399 = vunpack.c.l.b16 %v323
        %v400 = vunpack.c.l.b16 %v324
        %v401 = vunpack.c.l.b16 %v325
        %v402 = vunpack.c.l.b16 %v326
        %v403 = vunpack.c.l.b16 %v327
        %v404 = vunpack.c.l.b16 %v328
        %v405 = vunpack.c.l.b16 %v329
        %v406 = vpack.c.b16 %v375, %v374
        %v407 = vpack.c.b16 %v377, %v376
        %v408 = vpack.c.b16 %v379, %v378
        %v409 = vpack.c.b16 %v381, %v380
        %v410 = vpack.c.b16 %v383, %v382
        %v411 = vpack.c.b16 %v385, %v384
        %v412 = vpack.c.b16 %v387, %v386
        %v413 = vpack.c.b16 %v389, %v388
        %v414 = vpack.c.b16 %v391, %v390
        %v415 = vpack.c.b16 %v393, %v392
        %v416 = vpack.c.b16 %v395, %v394
        %v417 = vpack.c.b16 %v397, %v396
        %v418 = vpack.c.b16 %v399, %v398
        %v419 = vpack.c.b16 %v401, %v400
        %v420 = vpack.c.b16 %v403, %v402
        %v421 = vpack.c.b16 %v405, %v404
        %v430 = vunpack.c.l.b16 %v330
        %v431 = vunpack.c.l.b16 %v331
        %v432 = vunpack.c.l.b16 %v332
        %v433 = vunpack.c.l.b16 %v333
        %v434 = vunpack.c.l.b16 %v334
        %v435 = vunpack.c.l.b16 %v335
        %v436 = vunpack.c.l.b16 %v336
        %v437 = vunpack.c.l.b16 %v337
        %v438 = vpack.c.b16 %v431, %v430
        %v439 = vpack.c.b16 %v433, %v432
        %v440 = vpack.c.b16 %v435, %v434
        %v441 = vpack.c.b16 %v437, %v436
        %vm446 = vcmask 523264
        %v448 = vsel %vm446, %v406, 0
        %v451 = vsel %vm446, %v407, 0
        %v454 = vsel %vm446, %v408, 0
        %v457 = vsel %vm446, %v409, 0
        %v460 = vsel %vm446, %v410, 0
        %v463 = vsel %vm446, %v411, 0
        %v466 = vsel %vm446, %v412, 0
        %v469 = vsel %vm446, %v413, 0
        %v472 = vsel %vm446, %v414, 0
        %v475 = vsel %vm446, %v415, 0
        %v478 = vsel %vm446, %v416, 0
        %v481 = vsel %vm446, %v417, 0
        %v484 = vsel %vm446, %v418, 0
        %v487 = vsel %vm446, %v419, 0
        %v490 = vsel %vm446, %v420, 0
        %v493 = vsel %vm446, %v421, 0
        %495 = vmatpush.bf16.msra.mxu0 0
        %496 = vmatpush.bf16.msra.mxu0 0
        %497 = vmatpush.bf16.msra.mxu0 0
        %498 = vmatpush.bf16.msra.mxu0 0
        %499 = vmatpush.bf16.msra.mxu0 %v441
        %500 = vmatpush.bf16.msra.mxu0 %v440
        %501 = vmatpush.bf16.msra.mxu0 %v439
        %502 = vmatpush.bf16.msra.mxu0 %v438
        %503 = vmatmul.bf16.gmra.mxu0 %v448
        %v504 = vpop.f32.mrf.mxu0
        %v505 = vadd.f32 %v340, %v504
        %v506 = vpop.f32.mrf.mxu0
        %v507 = vadd.f32 %v340, %v506
        %508 = vmatmul.bf16.gmra.mxu0 %v451
        %v509 = vpop.f32.mrf.mxu0
        %v510 = vadd.f32 %v340, %v509
        %v511 = vpop.f32.mrf.mxu0
        %v512 = vadd.f32 %v340, %v511
        %513 = vmatmul.bf16.gmra.mxu0 %v454
        %v514 = vpop.f32.mrf.mxu0
        %v515 = vadd.f32 %v340, %v514
        %v516 = vpop.f32.mrf.mxu0
        %v517 = vadd.f32 %v340, %v516
        %518 = vmatmul.bf16.gmra.mxu0 %v457
        %v519 = vpop.f32.mrf.mxu0
        %v520 = vadd.f32 %v340, %v519
        %v521 = vpop.f32.mrf.mxu0
        %v522 = vadd.f32 %v340, %v521
        %523 = vmatmul.bf16.gmra.mxu0 %v460
        %v524 = vpop.f32.mrf.mxu0
        %v525 = vadd.f32 %v340, %v524
        %v526 = vpop.f32.mrf.mxu0
        %v527 = vadd.f32 %v340, %v526
        %528 = vmatmul.bf16.gmra.mxu0 %v463
        %v529 = vpop.f32.mrf.mxu0
        %v530 = vadd.f32 %v340, %v529
        %v531 = vpop.f32.mrf.mxu0
        %v532 = vadd.f32 %v340, %v531
        %533 = vmatmul.bf16.gmra.mxu0 %v466
        %v534 = vpop.f32.mrf.mxu0
        %v535 = vadd.f32 %v340, %v534
        %v536 = vpop.f32.mrf.mxu0
        %v537 = vadd.f32 %v340, %v536
        %538 = vmatmul.bf16.gmra.mxu0 %v469
        %v539 = vpop.f32.mrf.mxu0
        %v540 = vadd.f32 %v340, %v539
        %v541 = vpop.f32.mrf.mxu0
        %v542 = vadd.f32 %v340, %v541
        %543 = vmatmul.bf16.gmra.mxu0 %v472
        %v544 = vpop.f32.mrf.mxu0
        %v545 = vadd.f32 %v340, %v544
        %v546 = vpop.f32.mrf.mxu0
        %v547 = vadd.f32 %v340, %v546
        %548 = vmatmul.bf16.gmra.mxu0 %v475
        %v549 = vpop.f32.mrf.mxu0
        %v550 = vadd.f32 %v340, %v549
        %v551 = vpop.f32.mrf.mxu0
        %v552 = vadd.f32 %v340, %v551
        %553 = vmatmul.bf16.gmra.mxu0 %v478
        %v554 = vpop.f32.mrf.mxu0
        %v555 = vadd.f32 %v340, %v554
        %v556 = vpop.f32.mrf.mxu0
        %v557 = vadd.f32 %v340, %v556
        %558 = vmatmul.bf16.gmra.mxu0 %v481
        %v559 = vpop.f32.mrf.mxu0
        %v560 = vadd.f32 %v340, %v559
        %v561 = vpop.f32.mrf.mxu0
        %v562 = vadd.f32 %v340, %v561
        %563 = vmatmul.bf16.gmra.mxu0 %v484
        %v564 = vpop.f32.mrf.mxu0
        %v565 = vadd.f32 %v340, %v564
        %v566 = vpop.f32.mrf.mxu0
        %v567 = vadd.f32 %v340, %v566
        %568 = vmatmul.bf16.gmra.mxu0 %v487
        %v569 = vpop.f32.mrf.mxu0
        %v570 = vadd.f32 %v340, %v569
        %v571 = vpop.f32.mrf.mxu0
        %v572 = vadd.f32 %v340, %v571
        %573 = vmatmul.bf16.gmra.mxu0 %v490
        %v574 = vpop.f32.mrf.mxu0
        %v575 = vadd.f32 %v340, %v574
        %v576 = vpop.f32.mrf.mxu0
        %v577 = vadd.f32 %v340, %v576
        %578 = vmatmul.bf16.gmra.mxu0 %v493
        %v579 = vpop.f32.mrf.mxu0
        %v580 = vadd.f32 %v340, %v579
        %v581 = vpop.f32.mrf.mxu0
        %v582 = vadd.f32 %v340, %v581
        %583 = vdwg.mxu0
        %v584 = vmul.f32 %v505, %v505
        %v585 = vmul.f32 %v507, %v507
        %v586 = vmul.f32 %v510, %v510
        %v587 = vmul.f32 %v512, %v512
        %v588 = vmul.f32 %v515, %v515
        %v589 = vmul.f32 %v517, %v517
        %v590 = vmul.f32 %v520, %v520
        %v591 = vmul.f32 %v522, %v522
        %v592 = vmul.f32 %v525, %v525
        %v593 = vmul.f32 %v527, %v527
        %v594 = vmul.f32 %v530, %v530
        %v595 = vmul.f32 %v532, %v532
        %v596 = vmul.f32 %v535, %v535
        %v597 = vmul.f32 %v537, %v537
        %v598 = vmul.f32 %v540, %v540
        %v599 = vmul.f32 %v542, %v542
        %v600 = vmul.f32 %v545, %v545
        %v601 = vmul.f32 %v547, %v547
        %v602 = vmul.f32 %v550, %v550
        %v603 = vmul.f32 %v552, %v552
        %v604 = vmul.f32 %v555, %v555
        %v605 = vmul.f32 %v557, %v557
        %v606 = vmul.f32 %v560, %v560
        %v607 = vmul.f32 %v562, %v562
        %v608 = vmul.f32 %v565, %v565
        %v609 = vmul.f32 %v567, %v567
        %v610 = vmul.f32 %v570, %v570
        %v611 = vmul.f32 %v572, %v572
        %v612 = vmul.f32 %v575, %v575
        %v613 = vmul.f32 %v577, %v577
        %v614 = vmul.f32 %v580, %v580
        %v615 = vmul.f32 %v582, %v582
        %v616 = vmul.f32 %v505, %v584
        %v617 = vmul.f32 %v507, %v585
        %v618 = vmul.f32 %v510, %v586
        %v619 = vmul.f32 %v512, %v587
        %v620 = vmul.f32 %v515, %v588
        %v621 = vmul.f32 %v517, %v589
        %v622 = vmul.f32 %v520, %v590
        %v623 = vmul.f32 %v522, %v591
        %v624 = vmul.f32 %v525, %v592
        %v625 = vmul.f32 %v527, %v593
        %v626 = vmul.f32 %v530, %v594
        %v627 = vmul.f32 %v532, %v595
        %v628 = vmul.f32 %v535, %v596
        %v629 = vmul.f32 %v537, %v597
        %v630 = vmul.f32 %v540, %v598
        %v631 = vmul.f32 %v542, %v599
        %v632 = vmul.f32 %v545, %v600
        %v633 = vmul.f32 %v547, %v601
        %v634 = vmul.f32 %v550, %v602
        %v635 = vmul.f32 %v552, %v603
        %v636 = vmul.f32 %v555, %v604
        %v637 = vmul.f32 %v557, %v605
        %v638 = vmul.f32 %v560, %v606
        %v639 = vmul.f32 %v562, %v607
        %v640 = vmul.f32 %v565, %v608
        %v641 = vmul.f32 %v567, %v609
        %v642 = vmul.f32 %v570, %v610
        %v643 = vmul.f32 %v572, %v611
        %v644 = vmul.f32 %v575, %v612
        %v645 = vmul.f32 %v577, %v613
        %v646 = vmul.f32 %v580, %v614
        %v647 = vmul.f32 %v582, %v615
        %v648 = vmul.f32 %v616, 0.044715
        %v649 = vmul.f32 %v617, 0.044715
        %v650 = vmul.f32 %v618, 0.044715
        %v651 = vmul.f32 %v619, 0.044715
        %v652 = vmul.f32 %v620, 0.044715
        %v653 = vmul.f32 %v621, 0.044715
        %v654 = vmul.f32 %v622, 0.044715
        %v655 = vmul.f32 %v623, 0.044715
        %v656 = vmul.f32 %v624, 0.044715
        %v657 = vmul.f32 %v625, 0.044715
        %v658 = vmul.f32 %v626, 0.044715
        %v659 = vmul.f32 %v627, 0.044715
        %v660 = vmul.f32 %v628, 0.044715
        %v661 = vmul.f32 %v629, 0.044715
        %v662 = vmul.f32 %v630, 0.044715
        %v663 = vmul.f32 %v631, 0.044715
        %v664 = vmul.f32 %v632, 0.044715
        %v665 = vmul.f32 %v633, 0.044715
        %v666 = vmul.f32 %v634, 0.044715
        %v667 = vmul.f32 %v635, 0.044715
        %v668 = vmul.f32 %v636, 0.044715
        %v669 = vmul.f32 %v637, 0.044715
        %v670 = vmul.f32 %v638, 0.044715
        %v671 = vmul.f32 %v639, 0.044715
        %v672 = vmul.f32 %v640, 0.044715
        %v673 = vmul.f32 %v641, 0.044715
        %v674 = vmul.f32 %v642, 0.044715
        %v675 = vmul.f32 %v643, 0.044715
        %v676 = vmul.f32 %v644, 0.044715
        %v677 = vmul.f32 %v645, 0.044715
        %v678 = vmul.f32 %v646, 0.044715
        %v679 = vmul.f32 %v647, 0.044715
        %v680 = vadd.f32 %v505, %v648
        %v681 = vadd.f32 %v507, %v649
        %v682 = vadd.f32 %v510, %v650
        %v683 = vadd.f32 %v512, %v651
        %v684 = vadd.f32 %v515, %v652
        %v685 = vadd.f32 %v517, %v653
        %v686 = vadd.f32 %v520, %v654
        %v687 = vadd.f32 %v522, %v655
        %v688 = vadd.f32 %v525, %v656
        %v689 = vadd.f32 %v527, %v657
        %v690 = vadd.f32 %v530, %v658
        %v691 = vadd.f32 %v532, %v659
        %v692 = vadd.f32 %v535, %v660
        %v693 = vadd.f32 %v537, %v661
        %v694 = vadd.f32 %v540, %v662
        %v695 = vadd.f32 %v542, %v663
        %v696 = vadd.f32 %v545, %v664
        %v697 = vadd.f32 %v547, %v665
        %v698 = vadd.f32 %v550, %v666
        %v699 = vadd.f32 %v552, %v667
        %v700 = vadd.f32 %v555, %v668
        %v701 = vadd.f32 %v557, %v669
        %v702 = vadd.f32 %v560, %v670
        %v703 = vadd.f32 %v562, %v671
        %v704 = vadd.f32 %v565, %v672
        %v705 = vadd.f32 %v567, %v673
        %v706 = vadd.f32 %v570, %v674
        %v707 = vadd.f32 %v572, %v675
        %v708 = vadd.f32 %v575, %v676
        %v709 = vadd.f32 %v577, %v677
        %v710 = vadd.f32 %v580, %v678
        %v711 = vadd.f32 %v582, %v679
        %v712 = vmul.f32 %v680, 0.7978846
        %v713 = vmul.f32 %v681, 0.7978846
        %v714 = vmul.f32 %v682, 0.7978846
        %v715 = vmul.f32 %v683, 0.7978846
        %v716 = vmul.f32 %v684, 0.7978846
        %v717 = vmul.f32 %v685, 0.7978846
        %v718 = vmul.f32 %v686, 0.7978846
        %v719 = vmul.f32 %v687, 0.7978846
        %v720 = vmul.f32 %v688, 0.7978846
        %v721 = vmul.f32 %v689, 0.7978846
        %v722 = vmul.f32 %v690, 0.7978846
        %v723 = vmul.f32 %v691, 0.7978846
        %v724 = vmul.f32 %v692, 0.7978846
        %v725 = vmul.f32 %v693, 0.7978846
        %v726 = vmul.f32 %v694, 0.7978846
        %v727 = vmul.f32 %v695, 0.7978846
        %v728 = vmul.f32 %v696, 0.7978846
        %v729 = vmul.f32 %v697, 0.7978846
        %v730 = vmul.f32 %v698, 0.7978846
        %v731 = vmul.f32 %v699, 0.7978846
        %v732 = vmul.f32 %v700, 0.7978846
        %v733 = vmul.f32 %v701, 0.7978846
        %v734 = vmul.f32 %v702, 0.7978846
        %v735 = vmul.f32 %v703, 0.7978846
        %v736 = vmul.f32 %v704, 0.7978846
        %v737 = vmul.f32 %v705, 0.7978846
        %v738 = vmul.f32 %v706, 0.7978846
        %v739 = vmul.f32 %v707, 0.7978846
        %v740 = vmul.f32 %v708, 0.7978846
        %v741 = vmul.f32 %v709, 0.7978846
        %v742 = vmul.f32 %v710, 0.7978846
        %v743 = vmul.f32 %v711, 0.7978846
        %v744 = vtanh.pop %v712
        %v745 = vtanh.pop %v713
        %v746 = vtanh.pop %v714
        %v747 = vtanh.pop %v715
        %v748 = vtanh.pop %v716
        %v749 = vtanh.pop %v717
        %v750 = vtanh.pop %v718
        %v751 = vtanh.pop %v719
        %v752 = vtanh.pop %v720
        %v753 = vtanh.pop %v721
        %v754 = vtanh.pop %v722
        %v755 = vtanh.pop %v723
        %v756 = vtanh.pop %v724
        %v757 = vtanh.pop %v725
        %v758 = vtanh.pop %v726
        %v759 = vtanh.pop %v727
        %v760 = vtanh.pop %v728
        %v761 = vtanh.pop %v729
        %v762 = vtanh.pop %v730
        %v763 = vtanh.pop %v731
        %v764 = vtanh.pop %v732
        %v765 = vtanh.pop %v733
        %v766 = vtanh.pop %v734
        %v767 = vtanh.pop %v735
        %v768 = vtanh.pop %v736
        %v769 = vtanh.pop %v737
        %v770 = vtanh.pop %v738
        %v771 = vtanh.pop %v739
        %v772 = vtanh.pop %v740
        %v773 = vtanh.pop %v741
        %v774 = vtanh.pop %v742
        %v775 = vtanh.pop %v743
        %v776 = vadd.f32 %v744, 1.0
        %v777 = vadd.f32 %v745, 1.0
        %v778 = vadd.f32 %v746, 1.0
        %v779 = vadd.f32 %v747, 1.0
        %v780 = vadd.f32 %v748, 1.0
        %v781 = vadd.f32 %v749, 1.0
        %v782 = vadd.f32 %v750, 1.0
        %v783 = vadd.f32 %v751, 1.0
        %v784 = vadd.f32 %v752, 1.0
        %v785 = vadd.f32 %v753, 1.0
        %v786 = vadd.f32 %v754, 1.0
        %v787 = vadd.f32 %v755, 1.0
        %v788 = vadd.f32 %v756, 1.0
        %v789 = vadd.f32 %v757, 1.0
        %v790 = vadd.f32 %v758, 1.0
        %v791 = vadd.f32 %v759, 1.0
        %v792 = vadd.f32 %v760, 1.0
        %v793 = vadd.f32 %v761, 1.0
        %v794 = vadd.f32 %v762, 1.0
        %v795 = vadd.f32 %v763, 1.0
        %v796 = vadd.f32 %v764, 1.0
        %v797 = vadd.f32 %v765, 1.0
        %v798 = vadd.f32 %v766, 1.0
        %v799 = vadd.f32 %v767, 1.0
        %v800 = vadd.f32 %v768, 1.0
        %v801 = vadd.f32 %v769, 1.0
        %v802 = vadd.f32 %v770, 1.0
        %v803 = vadd.f32 %v771, 1.0
        %v804 = vadd.f32 %v772, 1.0
        %v805 = vadd.f32 %v773, 1.0
        %v806 = vadd.f32 %v774, 1.0
        %v807 = vadd.f32 %v775, 1.0
        %v808 = vmul.f32 %v776, 0.5
        %v809 = vmul.f32 %v777, 0.5
        %v810 = vmul.f32 %v778, 0.5
        %v811 = vmul.f32 %v779, 0.5
        %v812 = vmul.f32 %v780, 0.5
        %v813 = vmul.f32 %v781, 0.5
        %v814 = vmul.f32 %v782, 0.5
        %v815 = vmul.f32 %v783, 0.5
        %v816 = vmul.f32 %v784, 0.5
        %v817 = vmul.f32 %v785, 0.5
        %v818 = vmul.f32 %v786, 0.5
        %v819 = vmul.f32 %v787, 0.5
        %v820 = vmul.f32 %v788, 0.5
        %v821 = vmul.f32 %v789, 0.5
        %v822 = vmul.f32 %v790, 0.5
        %v823 = vmul.f32 %v791, 0.5
        %v824 = vmul.f32 %v792, 0.5
        %v825 = vmul.f32 %v793, 0.5
        %v826 = vmul.f32 %v794, 0.5
        %v827 = vmul.f32 %v795, 0.5
        %v828 = vmul.f32 %v796, 0.5
        %v829 = vmul.f32 %v797, 0.5
        %v830 = vmul.f32 %v798, 0.5
        %v831 = vmul.f32 %v799, 0.5
        %v832 = vmul.f32 %v800, 0.5
        %v833 = vmul.f32 %v801, 0.5
        %v834 = vmul.f32 %v802, 0.5
        %v835 = vmul.f32 %v803, 0.5
        %v836 = vmul.f32 %v804, 0.5
        %v837 = vmul.f32 %v805, 0.5
        %v838 = vmul.f32 %v806, 0.5
        %v839 = vmul.f32 %v807, 0.5
        %v840 = vmul.f32 %v505, %v808
        %v841 = vmul.f32 %v507, %v809
        %v842 = vmul.f32 %v510, %v810
        %v843 = vmul.f32 %v512, %v811
        %v844 = vmul.f32 %v515, %v812
        %v845 = vmul.f32 %v517, %v813
        %v846 = vmul.f32 %v520, %v814
        %v847 = vmul.f32 %v522, %v815
        %v848 = vmul.f32 %v525, %v816
        %v849 = vmul.f32 %v527, %v817
        %v850 = vmul.f32 %v530, %v818
        %v851 = vmul.f32 %v532, %v819
        %v852 = vmul.f32 %v535, %v820
        %v853 = vmul.f32 %v537, %v821
        %v854 = vmul.f32 %v540, %v822
        %v855 = vmul.f32 %v542, %v823
        %v856 = vmul.f32 %v545, %v824
        %v857 = vmul.f32 %v547, %v825
        %v858 = vmul.f32 %v550, %v826
        %v859 = vmul.f32 %v552, %v827
        %v860 = vmul.f32 %v555, %v828
        %v861 = vmul.f32 %v557, %v829
        %v862 = vmul.f32 %v560, %v830
        %v863 = vmul.f32 %v562, %v831
        %v864 = vmul.f32 %v565, %v832
        %v865 = vmul.f32 %v567, %v833
        %v866 = vmul.f32 %v570, %v834
        %v867 = vmul.f32 %v572, %v835
        %v868 = vmul.f32 %v575, %v836
        %v869 = vmul.f32 %v577, %v837
        %v870 = vmul.f32 %v580, %v838
        %v871 = vmul.f32 %v582, %v839
        %872 = vadd.xlane.f32.xlu0 %v840
        %v873 = vpop.xlane.xlu0 %872
        %874 = vadd.xlane.f32.xlu0 %v841
        %v875 = vpop.xlane.xlu0 %874
        %876 = vadd.xlane.f32.xlu0 %v842
        %v877 = vpop.xlane.xlu0 %876
        %878 = vadd.xlane.f32.xlu0 %v843
        %v879 = vpop.xlane.xlu0 %878
        %880 = vadd.xlane.f32.xlu0 %v844
        %v881 = vpop.xlane.xlu0 %880
        %882 = vadd.xlane.f32.xlu0 %v845
        %v883 = vpop.xlane.xlu0 %882
        %884 = vadd.xlane.f32.xlu0 %v846
        %v885 = vpop.xlane.xlu0 %884
        %886 = vadd.xlane.f32.xlu0 %v847
        %v887 = vpop.xlane.xlu0 %886
        %888 = vadd.xlane.f32.xlu0 %v848
        %v889 = vpop.xlane.xlu0 %888
        %890 = vadd.xlane.f32.xlu0 %v849
        %v891 = vpop.xlane.xlu0 %890
        %892 = vadd.xlane.f32.xlu0 %v850
        %v893 = vpop.xlane.xlu0 %892
        %894 = vadd.xlane.f32.xlu0 %v851
        %v895 = vpop.xlane.xlu0 %894
        %896 = vadd.xlane.f32.xlu0 %v852
        %v897 = vpop.xlane.xlu0 %896
        %898 = vadd.xlane.f32.xlu0 %v853
        %v899 = vpop.xlane.xlu0 %898
        %900 = vadd.xlane.f32.xlu0 %v854
        %v901 = vpop.xlane.xlu0 %900
        %902 = vadd.xlane.f32.xlu0 %v855
        %v903 = vpop.xlane.xlu0 %902
        %904 = vadd.xlane.f32.xlu0 %v856
        %v905 = vpop.xlane.xlu0 %904
        %906 = vadd.xlane.f32.xlu0 %v857
        %v907 = vpop.xlane.xlu0 %906
        %908 = vadd.xlane.f32.xlu0 %v858
        %v909 = vpop.xlane.xlu0 %908
        %910 = vadd.xlane.f32.xlu0 %v859
        %v911 = vpop.xlane.xlu0 %910
        %912 = vadd.xlane.f32.xlu0 %v860
        %v913 = vpop.xlane.xlu0 %912
        %914 = vadd.xlane.f32.xlu0 %v861
        %v915 = vpop.xlane.xlu0 %914
        %916 = vadd.xlane.f32.xlu0 %v862
        %v917 = vpop.xlane.xlu0 %916
        %918 = vadd.xlane.f32.xlu0 %v863
        %v919 = vpop.xlane.xlu0 %918
        %920 = vadd.xlane.f32.xlu0 %v864
        %v921 = vpop.xlane.xlu0 %920
        %922 = vadd.xlane.f32.xlu0 %v865
        %v923 = vpop.xlane.xlu0 %922
        %924 = vadd.xlane.f32.xlu0 %v866
        %v925 = vpop.xlane.xlu0 %924
        %926 = vadd.xlane.f32.xlu0 %v867
        %v927 = vpop.xlane.xlu0 %926
        %928 = vadd.xlane.f32.xlu0 %v868
        %v929 = vpop.xlane.xlu0 %928
        %930 = vadd.xlane.f32.xlu0 %v869
        %v931 = vpop.xlane.xlu0 %930
        %932 = vadd.xlane.f32.xlu0 %v870
        %v933 = vpop.xlane.xlu0 %932
        %934 = vadd.xlane.f32.xlu0 %v871
        %v935 = vpop.xlane.xlu0 %934
        %v936 = vrcp.pop 128.0
        %v937 = vmul.f32 128.0, %v936
        %v938 = vsub.f32 1.0, %v937
        %v939 = vmul.f32 %v936, %v938
        %v940 = vadd.f32 %v936, %v939
        %vm941 = vweird.f32 %v936
        %v942 = vsel %vm941, %v936, %v940
        %v943 = vmul.f32 %v873, %v942
        %v944 = vmul.f32 %v875, %v942
        %v945 = vmul.f32 %v877, %v942
        %v946 = vmul.f32 %v879, %v942
        %v947 = vmul.f32 %v881, %v942
        %v948 = vmul.f32 %v883, %v942
        %v949 = vmul.f32 %v885, %v942
        %v950 = vmul.f32 %v887, %v942
        %v951 = vmul.f32 %v889, %v942
        %v952 = vmul.f32 %v891, %v942
        %v953 = vmul.f32 %v893, %v942
        %v954 = vmul.f32 %v895, %v942
        %v955 = vmul.f32 %v897, %v942
        %v956 = vmul.f32 %v899, %v942
        %v957 = vmul.f32 %v901, %v942
        %v958 = vmul.f32 %v903, %v942
        %v959 = vmul.f32 %v905, %v942
        %v960 = vmul.f32 %v907, %v942
        %v961 = vmul.f32 %v909, %v942
        %v962 = vmul.f32 %v911, %v942
        %v963 = vmul.f32 %v913, %v942
        %v964 = vmul.f32 %v915, %v942
        %v965 = vmul.f32 %v917, %v942
        %v966 = vmul.f32 %v919, %v942
        %v967 = vmul.f32 %v921, %v942
        %v968 = vmul.f32 %v923, %v942
        %v969 = vmul.f32 %v925, %v942
        %v970 = vmul.f32 %v927, %v942
        %v971 = vmul.f32 %v929, %v942
        %v972 = vmul.f32 %v931, %v942
        %v973 = vmul.f32 %v933, %v942
        %v974 = vmul.f32 %v935, %v942
        %v975 = vmul.f32 %v840, %v840
        %v976 = vmul.f32 %v841, %v841
        %v977 = vmul.f32 %v842, %v842
        %v978 = vmul.f32 %v843, %v843
        %v979 = vmul.f32 %v844, %v844
        %v980 = vmul.f32 %v845, %v845
        %v981 = vmul.f32 %v846, %v846
        %v982 = vmul.f32 %v847, %v847
        %v983 = vmul.f32 %v848, %v848
        %v984 = vmul.f32 %v849, %v849
        %v985 = vmul.f32 %v850, %v850
        %v986 = vmul.f32 %v851, %v851
        %v987 = vmul.f32 %v852, %v852
        %v988 = vmul.f32 %v853, %v853
        %v989 = vmul.f32 %v854, %v854
        %v990 = vmul.f32 %v855, %v855
        %v991 = vmul.f32 %v856, %v856
        %v992 = vmul.f32 %v857, %v857
        %v993 = vmul.f32 %v858, %v858
        %v994 = vmul.f32 %v859, %v859
        %v995 = vmul.f32 %v860, %v860
        %v996 = vmul.f32 %v861, %v861
        %v997 = vmul.f32 %v862, %v862
        %v998 = vmul.f32 %v863, %v863
        %v999 = vmul.f32 %v864, %v864
        %v1000 = vmul.f32 %v865, %v865
        %v1001 = vmul.f32 %v866, %v866
        %v1002 = vmul.f32 %v867, %v867
        %v1003 = vmul.f32 %v868, %v868
        %v1004 = vmul.f32 %v869, %v869
        %v1005 = vmul.f32 %v870, %v870
        %v1006 = vmul.f32 %v871, %v871
        %1007 = vadd.xlane.f32.xlu0 %v975
        %v1008 = vpop.xlane.xlu0 %1007
        %1009 = vadd.xlane.f32.xlu0 %v976
        %v1010 = vpop.xlane.xlu0 %1009
        %1011 = vadd.xlane.f32.xlu0 %v977
        %v1012 = vpop.xlane.xlu0 %1011
        %1013 = vadd.xlane.f32.xlu0 %v978
        %v1014 = vpop.xlane.xlu0 %1013
        %1015 = vadd.xlane.f32.xlu0 %v979
        %v1016 = vpop.xlane.xlu0 %1015
        %1017 = vadd.xlane.f32.xlu0 %v980
        %v1018 = vpop.xlane.xlu0 %1017
        %1019 = vadd.xlane.f32.xlu0 %v981
        %v1020 = vpop.xlane.xlu0 %1019
        %1021 = vadd.xlane.f32.xlu0 %v982
        %v1022 = vpop.xlane.xlu0 %1021
        %1023 = vadd.xlane.f32.xlu0 %v983
        %v1024 = vpop.xlane.xlu0 %1023
        %1025 = vadd.xlane.f32.xlu0 %v984
        %v1026 = vpop.xlane.xlu0 %1025
        %1027 = vadd.xlane.f32.xlu0 %v985
        %v1028 = vpop.xlane.xlu0 %1027
        %1029 = vadd.xlane.f32.xlu0 %v986
        %v1030 = vpop.xlane.xlu0 %1029
        %1031 = vadd.xlane.f32.xlu0 %v987
        %v1032 = vpop.xlane.xlu0 %1031
        %1033 = vadd.xlane.f32.xlu0 %v988
        %v1034 = vpop.xlane.xlu0 %1033
        %1035 = vadd.xlane.f32.xlu0 %v989
        %v1036 = vpop.xlane.xlu0 %1035
        %1037 = vadd.xlane.f32.xlu0 %v990
        %v1038 = vpop.xlane.xlu0 %1037
        %1039 = vadd.xlane.f32.xlu0 %v991
        %v1040 = vpop.xlane.xlu0 %1039
        %1041 = vadd.xlane.f32.xlu0 %v992
        %v1042 = vpop.xlane.xlu0 %1041
        %1043 = vadd.xlane.f32.xlu0 %v993
        %v1044 = vpop.xlane.xlu0 %1043
        %1045 = vadd.xlane.f32.xlu0 %v994
        %v1046 = vpop.xlane.xlu0 %1045
        %1047 = vadd.xlane.f32.xlu0 %v995
        %v1048 = vpop.xlane.xlu0 %1047
        %1049 = vadd.xlane.f32.xlu0 %v996
        %v1050 = vpop.xlane.xlu0 %1049
        %1051 = vadd.xlane.f32.xlu0 %v997
        %v1052 = vpop.xlane.xlu0 %1051
        %1053 = vadd.xlane.f32.xlu0 %v998
        %v1054 = vpop.xlane.xlu0 %1053
        %1055 = vadd.xlane.f32.xlu0 %v999
        %v1056 = vpop.xlane.xlu0 %1055
        %1057 = vadd.xlane.f32.xlu0 %v1000
        %v1058 = vpop.xlane.xlu0 %1057
        %1059 = vadd.xlane.f32.xlu0 %v1001
        %v1060 = vpop.xlane.xlu0 %1059
        %1061 = vadd.xlane.f32.xlu0 %v1002
        %v1062 = vpop.xlane.xlu0 %1061
        %1063 = vadd.xlane.f32.xlu0 %v1003
        %v1064 = vpop.xlane.xlu0 %1063
        %1065 = vadd.xlane.f32.xlu0 %v1004
        %v1066 = vpop.xlane.xlu0 %1065
        %1067 = vadd.xlane.f32.xlu0 %v1005
        %v1068 = vpop.xlane.xlu0 %1067
        %1069 = vadd.xlane.f32.xlu0 %v1006
        %v1070 = vpop.xlane.xlu0 %1069
        %v1071 = vmul.f32 %v1008, %v942
        %v1072 = vmul.f32 %v1010, %v942
        %v1073 = vmul.f32 %v1012, %v942
        %v1074 = vmul.f32 %v1014, %v942
        %v1075 = vmul.f32 %v1016, %v942
        %v1076 = vmul.f32 %v1018, %v942
        %v1077 = vmul.f32 %v1020, %v942
        %v1078 = vmul.f32 %v1022, %v942
        %v1079 = vmul.f32 %v1024, %v942
        %v1080 = vmul.f32 %v1026, %v942
        %v1081 = vmul.f32 %v1028, %v942
        %v1082 = vmul.f32 %v1030, %v942
        %v1083 = vmul.f32 %v1032, %v942
        %v1084 = vmul.f32 %v1034, %v942
        %v1085 = vmul.f32 %v1036, %v942
        %v1086 = vmul.f32 %v1038, %v942
        %v1087 = vmul.f32 %v1040, %v942
        %v1088 = vmul.f32 %v1042, %v942
        %v1089 = vmul.f32 %v1044, %v942
        %v1090 = vmul.f32 %v1046, %v942
        %v1091 = vmul.f32 %v1048, %v942
        %v1092 = vmul.f32 %v1050, %v942
        %v1093 = vmul.f32 %v1052, %v942
        %v1094 = vmul.f32 %v1054, %v942
        %v1095 = vmul.f32 %v1056, %v942
        %v1096 = vmul.f32 %v1058, %v942
        %v1097 = vmul.f32 %v1060, %v942
        %v1098 = vmul.f32 %v1062, %v942
        %v1099 = vmul.f32 %v1064, %v942
        %v1100 = vmul.f32 %v1066, %v942
        %v1101 = vmul.f32 %v1068, %v942
        %v1102 = vmul.f32 %v1070, %v942
        %v1103 = vmul.f32 %v943, %v943
        %v1104 = vmul.f32 %v944, %v944
        %v1105 = vmul.f32 %v945, %v945
        %v1106 = vmul.f32 %v946, %v946
        %v1107 = vmul.f32 %v947, %v947
        %v1108 = vmul.f32 %v948, %v948
        %v1109 = vmul.f32 %v949, %v949
        %v1110 = vmul.f32 %v950, %v950
        %v1111 = vmul.f32 %v951, %v951
        %v1112 = vmul.f32 %v952, %v952
        %v1113 = vmul.f32 %v953, %v953
        %v1114 = vmul.f32 %v954, %v954
        %v1115 = vmul.f32 %v955, %v955
        %v1116 = vmul.f32 %v956, %v956
        %v1117 = vmul.f32 %v957, %v957
        %v1118 = vmul.f32 %v958, %v958
        %v1119 = vmul.f32 %v959, %v959
        %v1120 = vmul.f32 %v960, %v960
        %v1121 = vmul.f32 %v961, %v961
        %v1122 = vmul.f32 %v962, %v962
        %v1123 = vmul.f32 %v963, %v963
        %v1124 = vmul.f32 %v964, %v964
        %v1125 = vmul.f32 %v965, %v965
        %v1126 = vmul.f32 %v966, %v966
        %v1127 = vmul.f32 %v967, %v967
        %v1128 = vmul.f32 %v968, %v968
        %v1129 = vmul.f32 %v969, %v969
        %v1130 = vmul.f32 %v970, %v970
        %v1131 = vmul.f32 %v971, %v971
        %v1132 = vmul.f32 %v972, %v972
        %v1133 = vmul.f32 %v973, %v973
        %v1134 = vmul.f32 %v974, %v974
        %v1135 = vsub.f32 %v1071, %v1103
        %v1136 = vsub.f32 %v1072, %v1104
        %v1137 = vsub.f32 %v1073, %v1105
        %v1138 = vsub.f32 %v1074, %v1106
        %v1139 = vsub.f32 %v1075, %v1107
        %v1140 = vsub.f32 %v1076, %v1108
        %v1141 = vsub.f32 %v1077, %v1109
        %v1142 = vsub.f32 %v1078, %v1110
        %v1143 = vsub.f32 %v1079, %v1111
        %v1144 = vsub.f32 %v1080, %v1112
        %v1145 = vsub.f32 %v1081, %v1113
        %v1146 = vsub.f32 %v1082, %v1114
        %v1147 = vsub.f32 %v1083, %v1115
        %v1148 = vsub.f32 %v1084, %v1116
        %v1149 = vsub.f32 %v1085, %v1117
        %v1150 = vsub.f32 %v1086, %v1118
        %v1151 = vsub.f32 %v1087, %v1119
        %v1152 = vsub.f32 %v1088, %v1120
        %v1153 = vsub.f32 %v1089, %v1121
        %v1154 = vsub.f32 %v1090, %v1122
        %v1155 = vsub.f32 %v1091, %v1123
        %v1156 = vsub.f32 %v1092, %v1124
        %v1157 = vsub.f32 %v1093, %v1125
        %v1158 = vsub.f32 %v1094, %v1126
        %v1159 = vsub.f32 %v1095, %v1127
        %v1160 = vsub.f32 %v1096, %v1128
        %v1161 = vsub.f32 %v1097, %v1129
        %v1162 = vsub.f32 %v1098, %v1130
        %v1163 = vsub.f32 %v1099, %v1131
        %v1164 = vsub.f32 %v1100, %v1132
        %v1165 = vsub.f32 %v1101, %v1133
        %v1166 = vsub.f32 %v1102, %v1134
        %v1167 = vsub.f32 %v840, %v943
        %v1168 = vsub.f32 %v841, %v944
        %v1169 = vsub.f32 %v842, %v945
        %v1170 = vsub.f32 %v843, %v946
        %v1171 = vsub.f32 %v844, %v947
        %v1172 = vsub.f32 %v845, %v948
        %v1173 = vsub.f32 %v846, %v949
        %v1174 = vsub.f32 %v847, %v950
        %v1175 = vsub.f32 %v848, %v951
        %v1176 = vsub.f32 %v849, %v952
        %v1177 = vsub.f32 %v850, %v953
        %v1178 = vsub.f32 %v851, %v954
        %v1179 = vsub.f32 %v852, %v955
        %v1180 = vsub.f32 %v853, %v956
        %v1181 = vsub.f32 %v854, %v957
        %v1182 = vsub.f32 %v855, %v958
        %v1183 = vsub.f32 %v856, %v959
        %v1184 = vsub.f32 %v857, %v960
        %v1185 = vsub.f32 %v858, %v961
        %v1186 = vsub.f32 %v859, %v962
        %v1187 = vsub.f32 %v860, %v963
        %v1188 = vsub.f32 %v861, %v964
        %v1189 = vsub.f32 %v862, %v965
        %v1190 = vsub.f32 %v863, %v966
        %v1191 = vsub.f32 %v864, %v967
        %v1192 = vsub.f32 %v865, %v968
        %v1193 = vsub.f32 %v866, %v969
        %v1194 = vsub.f32 %v867, %v970
        %v1195 = vsub.f32 %v868, %v971
        %v1196 = vsub.f32 %v869, %v972
        %v1197 = vsub.f32 %v870, %v973
        %v1198 = vsub.f32 %v871, %v974
        %v1199 = vadd.f32 %v1135, 1e-05
        %v1200 = vadd.f32 %v1136, 1e-05
        %v1201 = vadd.f32 %v1137, 1e-05
        %v1202 = vadd.f32 %v1138, 1e-05
        %v1203 = vadd.f32 %v1139, 1e-05
        %v1204 = vadd.f32 %v1140, 1e-05
        %v1205 = vadd.f32 %v1141, 1e-05
        %v1206 = vadd.f32 %v1142, 1e-05
        %v1207 = vadd.f32 %v1143, 1e-05
        %v1208 = vadd.f32 %v1144, 1e-05
        %v1209 = vadd.f32 %v1145, 1e-05
        %v1210 = vadd.f32 %v1146, 1e-05
        %v1211 = vadd.f32 %v1147, 1e-05
        %v1212 = vadd.f32 %v1148, 1e-05
        %v1213 = vadd.f32 %v1149, 1e-05
        %v1214 = vadd.f32 %v1150, 1e-05
        %v1215 = vadd.f32 %v1151, 1e-05
        %v1216 = vadd.f32 %v1152, 1e-05
        %v1217 = vadd.f32 %v1153, 1e-05
        %v1218 = vadd.f32 %v1154, 1e-05
        %v1219 = vadd.f32 %v1155, 1e-05
        %v1220 = vadd.f32 %v1156, 1e-05
        %v1221 = vadd.f32 %v1157, 1e-05
        %v1222 = vadd.f32 %v1158, 1e-05
        %v1223 = vadd.f32 %v1159, 1e-05
        %v1224 = vadd.f32 %v1160, 1e-05
        %v1225 = vadd.f32 %v1161, 1e-05
        %v1226 = vadd.f32 %v1162, 1e-05
        %v1227 = vadd.f32 %v1163, 1e-05
        %v1228 = vadd.f32 %v1164, 1e-05
        %v1229 = vadd.f32 %v1165, 1e-05
        %v1230 = vadd.f32 %v1166, 1e-05
        %v1231 = vrsqrt.pop %v1199
        %v1232 = vmul.f32 %v1231, %v1199
        %v1233 = vmul.f32 %v1232, %v1231
        %v1234 = vmul.f32 0.5, %v1233
        %v1235 = vsub.f32 1.5, %v1234
        %v1236 = vmul.f32 %v1231, %v1235
        %vm1237 = vweird.f32 %v1199
        %vm1238 = vweird.f32 %v1231
        %vm1239 = vmor %vm1237, %vm1238
        %v1240 = vsel %vm1239, %v1231, %v1236
        %v1241 = vrsqrt.pop %v1200
        %v1242 = vmul.f32 %v1241, %v1200
        %v1243 = vmul.f32 %v1242, %v1241
        %v1244 = vmul.f32 0.5, %v1243
        %v1245 = vsub.f32 1.5, %v1244
        %v1246 = vmul.f32 %v1241, %v1245
        %vm1247 = vweird.f32 %v1200
        %vm1248 = vweird.f32 %v1241
        %vm1249 = vmor %vm1247, %vm1248
        %v1250 = vsel %vm1249, %v1241, %v1246
        %v1251 = vrsqrt.pop %v1201
        %v1252 = vmul.f32 %v1251, %v1201
        %v1253 = vmul.f32 %v1252, %v1251
        %v1254 = vmul.f32 0.5, %v1253
        %v1255 = vsub.f32 1.5, %v1254
        %v1256 = vmul.f32 %v1251, %v1255
        %vm1257 = vweird.f32 %v1201
        %vm1258 = vweird.f32 %v1251
        %vm1259 = vmor %vm1257, %vm1258
        %v1260 = vsel %vm1259, %v1251, %v1256
        %v1261 = vrsqrt.pop %v1202
        %v1262 = vmul.f32 %v1261, %v1202
        %v1263 = vmul.f32 %v1262, %v1261
        %v1264 = vmul.f32 0.5, %v1263
        %v1265 = vsub.f32 1.5, %v1264
        %v1266 = vmul.f32 %v1261, %v1265
        %vm1267 = vweird.f32 %v1202
        %vm1268 = vweird.f32 %v1261
        %vm1269 = vmor %vm1267, %vm1268
        %v1270 = vsel %vm1269, %v1261, %v1266
        %v1271 = vrsqrt.pop %v1203
        %v1272 = vmul.f32 %v1271, %v1203
        %v1273 = vmul.f32 %v1272, %v1271
        %v1274 = vmul.f32 0.5, %v1273
        %v1275 = vsub.f32 1.5, %v1274
        %v1276 = vmul.f32 %v1271, %v1275
        %vm1277 = vweird.f32 %v1203
        %vm1278 = vweird.f32 %v1271
        %vm1279 = vmor %vm1277, %vm1278
        %v1280 = vsel %vm1279, %v1271, %v1276
        %v1281 = vrsqrt.pop %v1204
        %v1282 = vmul.f32 %v1281, %v1204
        %v1283 = vmul.f32 %v1282, %v1281
        %v1284 = vmul.f32 0.5, %v1283
        %v1285 = vsub.f32 1.5, %v1284
        %v1286 = vmul.f32 %v1281, %v1285
        %vm1287 = vweird.f32 %v1204
        %vm1288 = vweird.f32 %v1281
        %vm1289 = vmor %vm1287, %vm1288
        %v1290 = vsel %vm1289, %v1281, %v1286
        %v1291 = vrsqrt.pop %v1205
        %v1292 = vmul.f32 %v1291, %v1205
        %v1293 = vmul.f32 %v1292, %v1291
        %v1294 = vmul.f32 0.5, %v1293
        %v1295 = vsub.f32 1.5, %v1294
        %v1296 = vmul.f32 %v1291, %v1295
        %vm1297 = vweird.f32 %v1205
        %vm1298 = vweird.f32 %v1291
        %vm1299 = vmor %vm1297, %vm1298
        %v1300 = vsel %vm1299, %v1291, %v1296
        %v1301 = vrsqrt.pop %v1206
        %v1302 = vmul.f32 %v1301, %v1206
        %v1303 = vmul.f32 %v1302, %v1301
        %v1304 = vmul.f32 0.5, %v1303
        %v1305 = vsub.f32 1.5, %v1304
        %v1306 = vmul.f32 %v1301, %v1305
        %vm1307 = vweird.f32 %v1206
        %vm1308 = vweird.f32 %v1301
        %vm1309 = vmor %vm1307, %vm1308
        %v1310 = vsel %vm1309, %v1301, %v1306
        %v1311 = vrsqrt.pop %v1207
        %v1312 = vmul.f32 %v1311, %v1207
        %v1313 = vmul.f32 %v1312, %v1311
        %v1314 = vmul.f32 0.5, %v1313
        %v1315 = vsub.f32 1.5, %v1314
        %v1316 = vmul.f32 %v1311, %v1315
        %vm1317 = vweird.f32 %v1207
        %vm1318 = vweird.f32 %v1311
        %vm1319 = vmor %vm1317, %vm1318
        %v1320 = vsel %vm1319, %v1311, %v1316
        %v1321 = vrsqrt.pop %v1208
        %v1322 = vmul.f32 %v1321, %v1208
        %v1323 = vmul.f32 %v1322, %v1321
        %v1324 = vmul.f32 0.5, %v1323
        %v1325 = vsub.f32 1.5, %v1324
        %v1326 = vmul.f32 %v1321, %v1325
        %vm1327 = vweird.f32 %v1208
        %vm1328 = vweird.f32 %v1321
        %vm1329 = vmor %vm1327, %vm1328
        %v1330 = vsel %vm1329, %v1321, %v1326
        %v1331 = vrsqrt.pop %v1209
        %v1332 = vmul.f32 %v1331, %v1209
        %v1333 = vmul.f32 %v1332, %v1331
        %v1334 = vmul.f32 0.5, %v1333
        %v1335 = vsub.f32 1.5, %v1334
        %v1336 = vmul.f32 %v1331, %v1335
        %vm1337 = vweird.f32 %v1209
        %vm1338 = vweird.f32 %v1331
        %vm1339 = vmor %vm1337, %vm1338
        %v1340 = vsel %vm1339, %v1331, %v1336
        %v1341 = vrsqrt.pop %v1210
        %v1342 = vmul.f32 %v1341, %v1210
        %v1343 = vmul.f32 %v1342, %v1341
        %v1344 = vmul.f32 0.5, %v1343
        %v1345 = vsub.f32 1.5, %v1344
        %v1346 = vmul.f32 %v1341, %v1345
        %vm1347 = vweird.f32 %v1210
        %vm1348 = vweird.f32 %v1341
        %vm1349 = vmor %vm1347, %vm1348
        %v1350 = vsel %vm1349, %v1341, %v1346
        %v1351 = vrsqrt.pop %v1211
        %v1352 = vmul.f32 %v1351, %v1211
        %v1353 = vmul.f32 %v1352, %v1351
        %v1354 = vmul.f32 0.5, %v1353
        %v1355 = vsub.f32 1.5, %v1354
        %v1356 = vmul.f32 %v1351, %v1355
        %vm1357 = vweird.f32 %v1211
        %vm1358 = vweird.f32 %v1351
        %vm1359 = vmor %vm1357, %vm1358
        %v1360 = vsel %vm1359, %v1351, %v1356
        %v1361 = vrsqrt.pop %v1212
        %v1362 = vmul.f32 %v1361, %v1212
        %v1363 = vmul.f32 %v1362, %v1361
        %v1364 = vmul.f32 0.5, %v1363
        %v1365 = vsub.f32 1.5, %v1364
        %v1366 = vmul.f32 %v1361, %v1365
        %vm1367 = vweird.f32 %v1212
        %vm1368 = vweird.f32 %v1361
        %vm1369 = vmor %vm1367, %vm1368
        %v1370 = vsel %vm1369, %v1361, %v1366
        %v1371 = vrsqrt.pop %v1213
        %v1372 = vmul.f32 %v1371, %v1213
        %v1373 = vmul.f32 %v1372, %v1371
        %v1374 = vmul.f32 0.5, %v1373
        %v1375 = vsub.f32 1.5, %v1374
        %v1376 = vmul.f32 %v1371, %v1375
        %vm1377 = vweird.f32 %v1213
        %vm1378 = vweird.f32 %v1371
        %vm1379 = vmor %vm1377, %vm1378
        %v1380 = vsel %vm1379, %v1371, %v1376
        %v1381 = vrsqrt.pop %v1214
        %v1382 = vmul.f32 %v1381, %v1214
        %v1383 = vmul.f32 %v1382, %v1381
        %v1384 = vmul.f32 0.5, %v1383
        %v1385 = vsub.f32 1.5, %v1384
        %v1386 = vmul.f32 %v1381, %v1385
        %vm1387 = vweird.f32 %v1214
        %vm1388 = vweird.f32 %v1381
        %vm1389 = vmor %vm1387, %vm1388
        %v1390 = vsel %vm1389, %v1381, %v1386
        %v1391 = vrsqrt.pop %v1215
        %v1392 = vmul.f32 %v1391, %v1215
        %v1393 = vmul.f32 %v1392, %v1391
        %v1394 = vmul.f32 0.5, %v1393
        %v1395 = vsub.f32 1.5, %v1394
        %v1396 = vmul.f32 %v1391, %v1395
        %vm1397 = vweird.f32 %v1215
        %vm1398 = vweird.f32 %v1391
        %vm1399 = vmor %vm1397, %vm1398
        %v1400 = vsel %vm1399, %v1391, %v1396
        %v1401 = vrsqrt.pop %v1216
        %v1402 = vmul.f32 %v1401, %v1216
        %v1403 = vmul.f32 %v1402, %v1401
        %v1404 = vmul.f32 0.5, %v1403
        %v1405 = vsub.f32 1.5, %v1404
        %v1406 = vmul.f32 %v1401, %v1405
        %vm1407 = vweird.f32 %v1216
        %vm1408 = vweird.f32 %v1401
        %vm1409 = vmor %vm1407, %vm1408
        %v1410 = vsel %vm1409, %v1401, %v1406
        %v1411 = vrsqrt.pop %v1217
        %v1412 = vmul.f32 %v1411, %v1217
        %v1413 = vmul.f32 %v1412, %v1411
        %v1414 = vmul.f32 0.5, %v1413
        %v1415 = vsub.f32 1.5, %v1414
        %v1416 = vmul.f32 %v1411, %v1415
        %vm1417 = vweird.f32 %v1217
        %vm1418 = vweird.f32 %v1411
        %vm1419 = vmor %vm1417, %vm1418
        %v1420 = vsel %vm1419, %v1411, %v1416
        %v1421 = vrsqrt.pop %v1218
        %v1422 = vmul.f32 %v1421, %v1218
        %v1423 = vmul.f32 %v1422, %v1421
        %v1424 = vmul.f32 0.5, %v1423
        %v1425 = vsub.f32 1.5, %v1424
        %v1426 = vmul.f32 %v1421, %v1425
        %vm1427 = vweird.f32 %v1218
        %vm1428 = vweird.f32 %v1421
        %vm1429 = vmor %vm1427, %vm1428
        %v1430 = vsel %vm1429, %v1421, %v1426
        %v1431 = vrsqrt.pop %v1219
        %v1432 = vmul.f32 %v1431, %v1219
        %v1433 = vmul.f32 %v1432, %v1431
        %v1434 = vmul.f32 0.5, %v1433
        %v1435 = vsub.f32 1.5, %v1434
        %v1436 = vmul.f32 %v1431, %v1435
        %vm1437 = vweird.f32 %v1219
        %vm1438 = vweird.f32 %v1431
        %vm1439 = vmor %vm1437, %vm1438
        %v1440 = vsel %vm1439, %v1431, %v1436
        %v1441 = vrsqrt.pop %v1220
        %v1442 = vmul.f32 %v1441, %v1220
        %v1443 = vmul.f32 %v1442, %v1441
        %v1444 = vmul.f32 0.5, %v1443
        %v1445 = vsub.f32 1.5, %v1444
        %v1446 = vmul.f32 %v1441, %v1445
        %vm1447 = vweird.f32 %v1220
        %vm1448 = vweird.f32 %v1441
        %vm1449 = vmor %vm1447, %vm1448
        %v1450 = vsel %vm1449, %v1441, %v1446
        %v1451 = vrsqrt.pop %v1221
        %v1452 = vmul.f32 %v1451, %v1221
        %v1453 = vmul.f32 %v1452, %v1451
        %v1454 = vmul.f32 0.5, %v1453
        %v1455 = vsub.f32 1.5, %v1454
        %v1456 = vmul.f32 %v1451, %v1455
        %vm1457 = vweird.f32 %v1221
        %vm1458 = vweird.f32 %v1451
        %vm1459 = vmor %vm1457, %vm1458
        %v1460 = vsel %vm1459, %v1451, %v1456
        %v1461 = vrsqrt.pop %v1222
        %v1462 = vmul.f32 %v1461, %v1222
        %v1463 = vmul.f32 %v1462, %v1461
        %v1464 = vmul.f32 0.5, %v1463
        %v1465 = vsub.f32 1.5, %v1464
        %v1466 = vmul.f32 %v1461, %v1465
        %vm1467 = vweird.f32 %v1222
        %vm1468 = vweird.f32 %v1461
        %vm1469 = vmor %vm1467, %vm1468
        %v1470 = vsel %vm1469, %v1461, %v1466
        %v1471 = vrsqrt.pop %v1223
        %v1472 = vmul.f32 %v1471, %v1223
        %v1473 = vmul.f32 %v1472, %v1471
        %v1474 = vmul.f32 0.5, %v1473
        %v1475 = vsub.f32 1.5, %v1474
        %v1476 = vmul.f32 %v1471, %v1475
        %vm1477 = vweird.f32 %v1223
        %vm1478 = vweird.f32 %v1471
        %vm1479 = vmor %vm1477, %vm1478
        %v1480 = vsel %vm1479, %v1471, %v1476
        %v1481 = vrsqrt.pop %v1224
        %v1482 = vmul.f32 %v1481, %v1224
        %v1483 = vmul.f32 %v1482, %v1481
        %v1484 = vmul.f32 0.5, %v1483
        %v1485 = vsub.f32 1.5, %v1484
        %v1486 = vmul.f32 %v1481, %v1485
        %vm1487 = vweird.f32 %v1224
        %vm1488 = vweird.f32 %v1481
        %vm1489 = vmor %vm1487, %vm1488
        %v1490 = vsel %vm1489, %v1481, %v1486
        %v1491 = vrsqrt.pop %v1225
        %v1492 = vmul.f32 %v1491, %v1225
        %v1493 = vmul.f32 %v1492, %v1491
        %v1494 = vmul.f32 0.5, %v1493
        %v1495 = vsub.f32 1.5, %v1494
        %v1496 = vmul.f32 %v1491, %v1495
        %vm1497 = vweird.f32 %v1225
        %vm1498 = vweird.f32 %v1491
        %vm1499 = vmor %vm1497, %vm1498
        %v1500 = vsel %vm1499, %v1491, %v1496
        %v1501 = vrsqrt.pop %v1226
        %v1502 = vmul.f32 %v1501, %v1226
        %v1503 = vmul.f32 %v1502, %v1501
        %v1504 = vmul.f32 0.5, %v1503
        %v1505 = vsub.f32 1.5, %v1504
        %v1506 = vmul.f32 %v1501, %v1505
        %vm1507 = vweird.f32 %v1226
        %vm1508 = vweird.f32 %v1501
        %vm1509 = vmor %vm1507, %vm1508
        %v1510 = vsel %vm1509, %v1501, %v1506
        %v1511 = vrsqrt.pop %v1227
        %v1512 = vmul.f32 %v1511, %v1227
        %v1513 = vmul.f32 %v1512, %v1511
        %v1514 = vmul.f32 0.5, %v1513
        %v1515 = vsub.f32 1.5, %v1514
        %v1516 = vmul.f32 %v1511, %v1515
        %vm1517 = vweird.f32 %v1227
        %vm1518 = vweird.f32 %v1511
        %vm1519 = vmor %vm1517, %vm1518
        %v1520 = vsel %vm1519, %v1511, %v1516
        %v1521 = vrsqrt.pop %v1228
        %v1522 = vmul.f32 %v1521, %v1228
        %v1523 = vmul.f32 %v1522, %v1521
        %v1524 = vmul.f32 0.5, %v1523
        %v1525 = vsub.f32 1.5, %v1524
        %v1526 = vmul.f32 %v1521, %v1525
        %vm1527 = vweird.f32 %v1228
        %vm1528 = vweird.f32 %v1521
        %vm1529 = vmor %vm1527, %vm1528
        %v1530 = vsel %vm1529, %v1521, %v1526
        %v1531 = vrsqrt.pop %v1229
        %v1532 = vmul.f32 %v1531, %v1229
        %v1533 = vmul.f32 %v1532, %v1531
        %v1534 = vmul.f32 0.5, %v1533
        %v1535 = vsub.f32 1.5, %v1534
        %v1536 = vmul.f32 %v1531, %v1535
        %vm1537 = vweird.f32 %v1229
        %vm1538 = vweird.f32 %v1531
        %vm1539 = vmor %vm1537, %vm1538
        %v1540 = vsel %vm1539, %v1531, %v1536
        %v1541 = vrsqrt.pop %v1230
        %v1542 = vmul.f32 %v1541, %v1230
        %v1543 = vmul.f32 %v1542, %v1541
        %v1544 = vmul.f32 0.5, %v1543
        %v1545 = vsub.f32 1.5, %v1544
        %v1546 = vmul.f32 %v1541, %v1545
        %vm1547 = vweird.f32 %v1230
        %vm1548 = vweird.f32 %v1541
        %vm1549 = vmor %vm1547, %vm1548
        %v1550 = vsel %vm1549, %v1541, %v1546
        %v1551 = vmul.f32 %v1167, %v1240
        %v1552 = vmul.f32 %v1168, %v1250
        %v1553 = vmul.f32 %v1169, %v1260
        %v1554 = vmul.f32 %v1170, %v1270
        %v1555 = vmul.f32 %v1171, %v1280
        %v1556 = vmul.f32 %v1172, %v1290
        %v1557 = vmul.f32 %v1173, %v1300
        %v1558 = vmul.f32 %v1174, %v1310
        %v1559 = vmul.f32 %v1175, %v1320
        %v1560 = vmul.f32 %v1176, %v1330
        %v1561 = vmul.f32 %v1177, %v1340
        %v1562 = vmul.f32 %v1178, %v1350
        %v1563 = vmul.f32 %v1179, %v1360
        %v1564 = vmul.f32 %v1180, %v1370
        %v1565 = vmul.f32 %v1181, %v1380
        %v1566 = vmul.f32 %v1182, %v1390
        %v1567 = vmul.f32 %v1183, %v1400
        %v1568 = vmul.f32 %v1184, %v1410
        %v1569 = vmul.f32 %v1185, %v1420
        %v1570 = vmul.f32 %v1186, %v1430
        %v1571 = vmul.f32 %v1187, %v1440
        %v1572 = vmul.f32 %v1188, %v1450
        %v1573 = vmul.f32 %v1189, %v1460
        %v1574 = vmul.f32 %v1190, %v1470
        %v1575 = vmul.f32 %v1191, %v1480
        %v1576 = vmul.f32 %v1192, %v1490
        %v1577 = vmul.f32 %v1193, %v1500
        %v1578 = vmul.f32 %v1194, %v1510
        %v1579 = vmul.f32 %v1195, %v1520
        %v1580 = vmul.f32 %v1196, %v1530
        %v1581 = vmul.f32 %v1197, %v1540
        %v1582 = vmul.f32 %v1198, %v1550
        %v1583 = vpack.c.bf16 %v1552, %v1551
        %v1584 = vpack.c.bf16 %v1554, %v1553
        %v1585 = vpack.c.bf16 %v1556, %v1555
        %v1586 = vpack.c.bf16 %v1558, %v1557
        %v1587 = vpack.c.bf16 %v1560, %v1559
        %v1588 = vpack.c.bf16 %v1562, %v1561
        %v1589 = vpack.c.bf16 %v1564, %v1563
        %v1590 = vpack.c.bf16 %v1566, %v1565
        %v1591 = vpack.c.bf16 %v1568, %v1567
        %v1592 = vpack.c.bf16 %v1570, %v1569
        %v1593 = vpack.c.bf16 %v1572, %v1571
        %v1594 = vpack.c.bf16 %v1574, %v1573
        %v1595 = vpack.c.bf16 %v1576, %v1575
        %v1596 = vpack.c.bf16 %v1578, %v1577
        %v1597 = vpack.c.bf16 %v1580, %v1579
        %v1598 = vpack.c.bf16 %v1582, %v1581
        %v1599 = vld [vmem:[%s3] sm:$0xf]
        %v1600 = vld [vmem:[%s3 + $0x4] sm:$0xf]
        %v1601 = vld [vmem:[%s3 + $0x8] sm:$0xf]
        %v1602 = vld [vmem:[%s3 + $0xc] sm:$0xf]
        %v1603 = vld [vmem:[%s3 + $0x10] sm:$0xf]
        %v1604 = vld [vmem:[%s3 + $0x14] sm:$0xf]
        %v1605 = vld [vmem:[%s3 + $0x18] sm:$0xf]
        %v1606 = vld [vmem:[%s3 + $0x1c] sm:$0xf]
        %v1607 = vld [vmem:[%s3 + $0x20] sm:$0xf]
        %v1608 = vld [vmem:[%s3 + $0x24] sm:$0xf]
        %v1609 = vld [vmem:[%s3 + $0x28] sm:$0xf]
        %v1610 = vld [vmem:[%s3 + $0x2c] sm:$0xf]
        %v1611 = vld [vmem:[%s3 + $0x30] sm:$0xf]
        %v1612 = vld [vmem:[%s3 + $0x34] sm:$0xf]
        %v1613 = vld [vmem:[%s3 + $0x38] sm:$0xf]
        %v1614 = vld [vmem:[%s3 + $0x3c] sm:$0xf]
        %v1615 = vld [vmem:[%s4] sm:$0x1]
        %v1617 = vperm.slane %v1615, 0
        %v1635 = vunpack.c.l.b16 %v1599
        %v1636 = vunpack.c.l.b16 %v1600
        %v1637 = vunpack.c.l.b16 %v1601
        %v1638 = vunpack.c.l.b16 %v1602
        %v1639 = vunpack.c.l.b16 %v1603
        %v1640 = vunpack.c.l.b16 %v1604
        %v1641 = vunpack.c.l.b16 %v1605
        %v1642 = vunpack.c.l.b16 %v1606
        %v1643 = vunpack.c.l.b16 %v1607
        %v1644 = vunpack.c.l.b16 %v1608
        %v1645 = vunpack.c.l.b16 %v1609
        %v1646 = vunpack.c.l.b16 %v1610
        %v1647 = vunpack.c.l.b16 %v1611
        %v1648 = vunpack.c.l.b16 %v1612
        %v1649 = vunpack.c.l.b16 %v1613
        %v1650 = vunpack.c.l.b16 %v1614
        %v1651 = vpack.c.b16 %v1636, %v1635
        %v1652 = vpack.c.b16 %v1638, %v1637
        %v1653 = vpack.c.b16 %v1640, %v1639
        %v1654 = vpack.c.b16 %v1642, %v1641
        %v1655 = vpack.c.b16 %v1644, %v1643
        %v1656 = vpack.c.b16 %v1646, %v1645
        %v1657 = vpack.c.b16 %v1648, %v1647
        %v1658 = vpack.c.b16 %v1650, %v1649
        %1667 = vmatpush.bf16.msra.mxu0 %v1658
        %1668 = vmatpush.bf16.msra.mxu0 %v1657
        %1669 = vmatpush.bf16.msra.mxu0 %v1656
        %1670 = vmatpush.bf16.msra.mxu0 %v1655
        %1671 = vmatpush.bf16.msra.mxu0 %v1654
        %1672 = vmatpush.bf16.msra.mxu0 %v1653
        %1673 = vmatpush.bf16.msra.mxu0 %v1652
        %1674 = vmatpush.bf16.msra.mxu0 %v1651
        %1675 = vmatmul.bf16.gmra.mxu0 %v1583
        %v1676 = vpop.f32.mrf.mxu0
        %v1677 = vadd.f32 %v1617, %v1676
        %v1678 = vpop.f32.mrf.mxu0
        %v1679 = vadd.f32 %v1617, %v1678
        %1680 = vmatmul.bf16.gmra.mxu0 %v1584
        %v1681 = vpop.f32.mrf.mxu0
        %v1682 = vadd.f32 %v1617, %v1681
        %v1683 = vpop.f32.mrf.mxu0
        %v1684 = vadd.f32 %v1617, %v1683
        %1685 = vmatmul.bf16.gmra.mxu0 %v1585
        %v1686 = vpop.f32.mrf.mxu0
        %v1687 = vadd.f32 %v1617, %v1686
        %v1688 = vpop.f32.mrf.mxu0
        %v1689 = vadd.f32 %v1617, %v1688
        %1690 = vmatmul.bf16.gmra.mxu0 %v1586
        %v1691 = vpop.f32.mrf.mxu0
        %v1692 = vadd.f32 %v1617, %v1691
        %v1693 = vpop.f32.mrf.mxu0
        %v1694 = vadd.f32 %v1617, %v1693
        %1695 = vmatmul.bf16.gmra.mxu0 %v1587
        %v1696 = vpop.f32.mrf.mxu0
        %v1697 = vadd.f32 %v1617, %v1696
        %v1698 = vpop.f32.mrf.mxu0
        %v1699 = vadd.f32 %v1617, %v1698
        %1700 = vmatmul.bf16.gmra.mxu0 %v1588
        %v1701 = vpop.f32.mrf.mxu0
        %v1702 = vadd.f32 %v1617, %v1701
        %v1703 = vpop.f32.mrf.mxu0
        %v1704 = vadd.f32 %v1617, %v1703
        %1705 = vmatmul.bf16.gmra.mxu0 %v1589
        %v1706 = vpop.f32.mrf.mxu0
        %v1707 = vadd.f32 %v1617, %v1706
        %v1708 = vpop.f32.mrf.mxu0
        %v1709 = vadd.f32 %v1617, %v1708
        %1710 = vmatmul.bf16.gmra.mxu0 %v1590
        %v1711 = vpop.f32.mrf.mxu0
        %v1712 = vadd.f32 %v1617, %v1711
        %v1713 = vpop.f32.mrf.mxu0
        %v1714 = vadd.f32 %v1617, %v1713
        %1715 = vmatmul.bf16.gmra.mxu0 %v1591
        %v1716 = vpop.f32.mrf.mxu0
        %v1717 = vadd.f32 %v1617, %v1716
        %v1718 = vpop.f32.mrf.mxu0
        %v1719 = vadd.f32 %v1617, %v1718
        %1720 = vmatmul.bf16.gmra.mxu0 %v1592
        %v1721 = vpop.f32.mrf.mxu0
        %v1722 = vadd.f32 %v1617, %v1721
        %v1723 = vpop.f32.mrf.mxu0
        %v1724 = vadd.f32 %v1617, %v1723
        %1725 = vmatmul.bf16.gmra.mxu0 %v1593
        %v1726 = vpop.f32.mrf.mxu0
        %v1727 = vadd.f32 %v1617, %v1726
        %v1728 = vpop.f32.mrf.mxu0
        %v1729 = vadd.f32 %v1617, %v1728
        %1730 = vmatmul.bf16.gmra.mxu0 %v1594
        %v1731 = vpop.f32.mrf.mxu0
        %v1732 = vadd.f32 %v1617, %v1731
        %v1733 = vpop.f32.mrf.mxu0
        %v1734 = vadd.f32 %v1617, %v1733
        %1735 = vmatmul.bf16.gmra.mxu0 %v1595
        %v1736 = vpop.f32.mrf.mxu0
        %v1737 = vadd.f32 %v1617, %v1736
        %v1738 = vpop.f32.mrf.mxu0
        %v1739 = vadd.f32 %v1617, %v1738
        %1740 = vmatmul.bf16.gmra.mxu0 %v1596
        %v1741 = vpop.f32.mrf.mxu0
        %v1742 = vadd.f32 %v1617, %v1741
        %v1743 = vpop.f32.mrf.mxu0
        %v1744 = vadd.f32 %v1617, %v1743
        %1745 = vmatmul.bf16.gmra.mxu0 %v1597
        %v1746 = vpop.f32.mrf.mxu0
        %v1747 = vadd.f32 %v1617, %v1746
        %v1748 = vpop.f32.mrf.mxu0
        %v1749 = vadd.f32 %v1617, %v1748
        %1750 = vmatmul.bf16.gmra.mxu0 %v1598
        %v1751 = vpop.f32.mrf.mxu0
        %v1752 = vadd.f32 %v1617, %v1751
        %v1753 = vpop.f32.mrf.mxu0
        %v1754 = vadd.f32 %v1617, %v1753
        %1755 = vdwg.mxu0
        %v1756 = vmul.f32 %v1677, %v1677
        %v1757 = vmul.f32 %v1679, %v1679
        %v1758 = vmul.f32 %v1682, %v1682
        %v1759 = vmul.f32 %v1684, %v1684
        %v1760 = vmul.f32 %v1687, %v1687
        %v1761 = vmul.f32 %v1689, %v1689
        %v1762 = vmul.f32 %v1692, %v1692
        %v1763 = vmul.f32 %v1694, %v1694
        %v1764 = vmul.f32 %v1697, %v1697
        %v1765 = vmul.f32 %v1699, %v1699
        %v1766 = vmul.f32 %v1702, %v1702
        %v1767 = vmul.f32 %v1704, %v1704
        %v1768 = vmul.f32 %v1707, %v1707
        %v1769 = vmul.f32 %v1709, %v1709
        %v1770 = vmul.f32 %v1712, %v1712
        %v1771 = vmul.f32 %v1714, %v1714
        %v1772 = vmul.f32 %v1717, %v1717
        %v1773 = vmul.f32 %v1719, %v1719
        %v1774 = vmul.f32 %v1722, %v1722
        %v1775 = vmul.f32 %v1724, %v1724
        %v1776 = vmul.f32 %v1727, %v1727
        %v1777 = vmul.f32 %v1729, %v1729
        %v1778 = vmul.f32 %v1732, %v1732
        %v1779 = vmul.f32 %v1734, %v1734
        %v1780 = vmul.f32 %v1737, %v1737
        %v1781 = vmul.f32 %v1739, %v1739
        %v1782 = vmul.f32 %v1742, %v1742
        %v1783 = vmul.f32 %v1744, %v1744
        %v1784 = vmul.f32 %v1747, %v1747
        %v1785 = vmul.f32 %v1749, %v1749
        %v1786 = vmul.f32 %v1752, %v1752
        %v1787 = vmul.f32 %v1754, %v1754
        %v1788 = vmul.f32 %v1677, %v1756
        %v1789 = vmul.f32 %v1679, %v1757
        %v1790 = vmul.f32 %v1682, %v1758
        %v1791 = vmul.f32 %v1684, %v1759
        %v1792 = vmul.f32 %v1687, %v1760
        %v1793 = vmul.f32 %v1689, %v1761
        %v1794 = vmul.f32 %v1692, %v1762
        %v1795 = vmul.f32 %v1694, %v1763
        %v1796 = vmul.f32 %v1697, %v1764
        %v1797 = vmul.f32 %v1699, %v1765
        %v1798 = vmul.f32 %v1702, %v1766
        %v1799 = vmul.f32 %v1704, %v1767
        %v1800 = vmul.f32 %v1707, %v1768
        %v1801 = vmul.f32 %v1709, %v1769
        %v1802 = vmul.f32 %v1712, %v1770
        %v1803 = vmul.f32 %v1714, %v1771
        %v1804 = vmul.f32 %v1717, %v1772
        %v1805 = vmul.f32 %v1719, %v1773
        %v1806 = vmul.f32 %v1722, %v1774
        %v1807 = vmul.f32 %v1724, %v1775
        %v1808 = vmul.f32 %v1727, %v1776
        %v1809 = vmul.f32 %v1729, %v1777
        %v1810 = vmul.f32 %v1732, %v1778
        %v1811 = vmul.f32 %v1734, %v1779
        %v1812 = vmul.f32 %v1737, %v1780
        %v1813 = vmul.f32 %v1739, %v1781
        %v1814 = vmul.f32 %v1742, %v1782
        %v1815 = vmul.f32 %v1744, %v1783
        %v1816 = vmul.f32 %v1747, %v1784
        %v1817 = vmul.f32 %v1749, %v1785
        %v1818 = vmul.f32 %v1752, %v1786
        %v1819 = vmul.f32 %v1754, %v1787
        %v1820 = vmul.f32 %v1788, 0.044715
        %v1821 = vmul.f32 %v1789, 0.044715
        %v1822 = vmul.f32 %v1790, 0.044715
        %v1823 = vmul.f32 %v1791, 0.044715
        %v1824 = vmul.f32 %v1792, 0.044715
        %v1825 = vmul.f32 %v1793, 0.044715
        %v1826 = vmul.f32 %v1794, 0.044715
        %v1827 = vmul.f32 %v1795, 0.044715
        %v1828 = vmul.f32 %v1796, 0.044715
        %v1829 = vmul.f32 %v1797, 0.044715
        %v1830 = vmul.f32 %v1798, 0.044715
        %v1831 = vmul.f32 %v1799, 0.044715
        %v1832 = vmul.f32 %v1800, 0.044715
        %v1833 = vmul.f32 %v1801, 0.044715
        %v1834 = vmul.f32 %v1802, 0.044715
        %v1835 = vmul.f32 %v1803, 0.044715
        %v1836 = vmul.f32 %v1804, 0.044715
        %v1837 = vmul.f32 %v1805, 0.044715
        %v1838 = vmul.f32 %v1806, 0.044715
        %v1839 = vmul.f32 %v1807, 0.044715
        %v1840 = vmul.f32 %v1808, 0.044715
        %v1841 = vmul.f32 %v1809, 0.044715
        %v1842 = vmul.f32 %v1810, 0.044715
        %v1843 = vmul.f32 %v1811, 0.044715
        %v1844 = vmul.f32 %v1812, 0.044715
        %v1845 = vmul.f32 %v1813, 0.044715
        %v1846 = vmul.f32 %v1814, 0.044715
        %v1847 = vmul.f32 %v1815, 0.044715
        %v1848 = vmul.f32 %v1816, 0.044715
        %v1849 = vmul.f32 %v1817, 0.044715
        %v1850 = vmul.f32 %v1818, 0.044715
        %v1851 = vmul.f32 %v1819, 0.044715
        %v1852 = vadd.f32 %v1677, %v1820
        %v1853 = vadd.f32 %v1679, %v1821
        %v1854 = vadd.f32 %v1682, %v1822
        %v1855 = vadd.f32 %v1684, %v1823
        %v1856 = vadd.f32 %v1687, %v1824
        %v1857 = vadd.f32 %v1689, %v1825
        %v1858 = vadd.f32 %v1692, %v1826
        %v1859 = vadd.f32 %v1694, %v1827
        %v1860 = vadd.f32 %v1697, %v1828
        %v1861 = vadd.f32 %v1699, %v1829
        %v1862 = vadd.f32 %v1702, %v1830
        %v1863 = vadd.f32 %v1704, %v1831
        %v1864 = vadd.f32 %v1707, %v1832
        %v1865 = vadd.f32 %v1709, %v1833
        %v1866 = vadd.f32 %v1712, %v1834
        %v1867 = vadd.f32 %v1714, %v1835
        %v1868 = vadd.f32 %v1717, %v1836
        %v1869 = vadd.f32 %v1719, %v1837
        %v1870 = vadd.f32 %v1722, %v1838
        %v1871 = vadd.f32 %v1724, %v1839
        %v1872 = vadd.f32 %v1727, %v1840
        %v1873 = vadd.f32 %v1729, %v1841
        %v1874 = vadd.f32 %v1732, %v1842
        %v1875 = vadd.f32 %v1734, %v1843
        %v1876 = vadd.f32 %v1737, %v1844
        %v1877 = vadd.f32 %v1739, %v1845
        %v1878 = vadd.f32 %v1742, %v1846
        %v1879 = vadd.f32 %v1744, %v1847
        %v1880 = vadd.f32 %v1747, %v1848
        %v1881 = vadd.f32 %v1749, %v1849
        %v1882 = vadd.f32 %v1752, %v1850
        %v1883 = vadd.f32 %v1754, %v1851
        %v1884 = vmul.f32 %v1852, 0.7978846
        %v1885 = vmul.f32 %v1853, 0.7978846
        %v1886 = vmul.f32 %v1854, 0.7978846
        %v1887 = vmul.f32 %v1855, 0.7978846
        %v1888 = vmul.f32 %v1856, 0.7978846
        %v1889 = vmul.f32 %v1857, 0.7978846
        %v1890 = vmul.f32 %v1858, 0.7978846
        %v1891 = vmul.f32 %v1859, 0.7978846
        %v1892 = vmul.f32 %v1860, 0.7978846
        %v1893 = vmul.f32 %v1861, 0.7978846
        %v1894 = vmul.f32 %v1862, 0.7978846
        %v1895 = vmul.f32 %v1863, 0.7978846
        %v1896 = vmul.f32 %v1864, 0.7978846
        %v1897 = vmul.f32 %v1865, 0.7978846
        %v1898 = vmul.f32 %v1866, 0.7978846
        %v1899 = vmul.f32 %v1867, 0.7978846
        %v1900 = vmul.f32 %v1868, 0.7978846
        %v1901 = vmul.f32 %v1869, 0.7978846
        %v1902 = vmul.f32 %v1870, 0.7978846
        %v1903 = vmul.f32 %v1871, 0.7978846
        %v1904 = vmul.f32 %v1872, 0.7978846
        %v1905 = vmul.f32 %v1873, 0.7978846
        %v1906 = vmul.f32 %v1874, 0.7978846
        %v1907 = vmul.f32 %v1875, 0.7978846
        %v1908 = vmul.f32 %v1876, 0.7978846
        %v1909 = vmul.f32 %v1877, 0.7978846
        %v1910 = vmul.f32 %v1878, 0.7978846
        %v1911 = vmul.f32 %v1879, 0.7978846
        %v1912 = vmul.f32 %v1880, 0.7978846
        %v1913 = vmul.f32 %v1881, 0.7978846
        %v1914 = vmul.f32 %v1882, 0.7978846
        %v1915 = vmul.f32 %v1883, 0.7978846
        %v1916 = vtanh.pop %v1884
        %v1917 = vtanh.pop %v1885
        %v1918 = vtanh.pop %v1886
        %v1919 = vtanh.pop %v1887
        %v1920 = vtanh.pop %v1888
        %v1921 = vtanh.pop %v1889
        %v1922 = vtanh.pop %v1890
        %v1923 = vtanh.pop %v1891
        %v1924 = vtanh.pop %v1892
        %v1925 = vtanh.pop %v1893
        %v1926 = vtanh.pop %v1894
        %v1927 = vtanh.pop %v1895
        %v1928 = vtanh.pop %v1896
        %v1929 = vtanh.pop %v1897
        %v1930 = vtanh.pop %v1898
        %v1931 = vtanh.pop %v1899
        %v1932 = vtanh.pop %v1900
        %v1933 = vtanh.pop %v1901
        %v1934 = vtanh.pop %v1902
        %v1935 = vtanh.pop %v1903
        %v1936 = vtanh.pop %v1904
        %v1937 = vtanh.pop %v1905
        %v1938 = vtanh.pop %v1906
        %v1939 = vtanh.pop %v1907
        %v1940 = vtanh.pop %v1908
        %v1941 = vtanh.pop %v1909
        %v1942 = vtanh.pop %v1910
        %v1943 = vtanh.pop %v1911
        %v1944 = vtanh.pop %v1912
        %v1945 = vtanh.pop %v1913
        %v1946 = vtanh.pop %v1914
        %v1947 = vtanh.pop %v1915
        %v1948 = vadd.f32 %v1916, 1.0
        %v1949 = vadd.f32 %v1917, 1.0
        %v1950 = vadd.f32 %v1918, 1.0
        %v1951 = vadd.f32 %v1919, 1.0
        %v1952 = vadd.f32 %v1920, 1.0
        %v1953 = vadd.f32 %v1921, 1.0
        %v1954 = vadd.f32 %v1922, 1.0
        %v1955 = vadd.f32 %v1923, 1.0
        %v1956 = vadd.f32 %v1924, 1.0
        %v1957 = vadd.f32 %v1925, 1.0
        %v1958 = vadd.f32 %v1926, 1.0
        %v1959 = vadd.f32 %v1927, 1.0
        %v1960 = vadd.f32 %v1928, 1.0
        %v1961 = vadd.f32 %v1929, 1.0
        %v1962 = vadd.f32 %v1930, 1.0
        %v1963 = vadd.f32 %v1931, 1.0
        %v1964 = vadd.f32 %v1932, 1.0
        %v1965 = vadd.f32 %v1933, 1.0
        %v1966 = vadd.f32 %v1934, 1.0
        %v1967 = vadd.f32 %v1935, 1.0
        %v1968 = vadd.f32 %v1936, 1.0
        %v1969 = vadd.f32 %v1937, 1.0
        %v1970 = vadd.f32 %v1938, 1.0
        %v1971 = vadd.f32 %v1939, 1.0
        %v1972 = vadd.f32 %v1940, 1.0
        %v1973 = vadd.f32 %v1941, 1.0
        %v1974 = vadd.f32 %v1942, 1.0
        %v1975 = vadd.f32 %v1943, 1.0
        %v1976 = vadd.f32 %v1944, 1.0
        %v1977 = vadd.f32 %v1945, 1.0
        %v1978 = vadd.f32 %v1946, 1.0
        %v1979 = vadd.f32 %v1947, 1.0
        %v1980 = vmul.f32 %v1948, 0.5
        %v1981 = vmul.f32 %v1949, 0.5
        %v1982 = vmul.f32 %v1950, 0.5
        %v1983 = vmul.f32 %v1951, 0.5
        %v1984 = vmul.f32 %v1952, 0.5
        %v1985 = vmul.f32 %v1953, 0.5
        %v1986 = vmul.f32 %v1954, 0.5
        %v1987 = vmul.f32 %v1955, 0.5
        %v1988 = vmul.f32 %v1956, 0.5
        %v1989 = vmul.f32 %v1957, 0.5
        %v1990 = vmul.f32 %v1958, 0.5
        %v1991 = vmul.f32 %v1959, 0.5
        %v1992 = vmul.f32 %v1960, 0.5
        %v1993 = vmul.f32 %v1961, 0.5
        %v1994 = vmul.f32 %v1962, 0.5
        %v1995 = vmul.f32 %v1963, 0.5
        %v1996 = vmul.f32 %v1964, 0.5
        %v1997 = vmul.f32 %v1965, 0.5
        %v1998 = vmul.f32 %v1966, 0.5
        %v1999 = vmul.f32 %v1967, 0.5
        %v2000 = vmul.f32 %v1968, 0.5
        %v2001 = vmul.f32 %v1969, 0.5
        %v2002 = vmul.f32 %v1970, 0.5
        %v2003 = vmul.f32 %v1971, 0.5
        %v2004 = vmul.f32 %v1972, 0.5
        %v2005 = vmul.f32 %v1973, 0.5
        %v2006 = vmul.f32 %v1974, 0.5
        %v2007 = vmul.f32 %v1975, 0.5
        %v2008 = vmul.f32 %v1976, 0.5
        %v2009 = vmul.f32 %v1977, 0.5
        %v2010 = vmul.f32 %v1978, 0.5
        %v2011 = vmul.f32 %v1979, 0.5
        %v2012 = vmul.f32 %v1677, %v1980
        %v2013 = vmul.f32 %v1679, %v1981
        %v2014 = vmul.f32 %v1682, %v1982
        %v2015 = vmul.f32 %v1684, %v1983
        %v2016 = vmul.f32 %v1687, %v1984
        %v2017 = vmul.f32 %v1689, %v1985
        %v2018 = vmul.f32 %v1692, %v1986
        %v2019 = vmul.f32 %v1694, %v1987
        %v2020 = vmul.f32 %v1697, %v1988
        %v2021 = vmul.f32 %v1699, %v1989
        %v2022 = vmul.f32 %v1702, %v1990
        %v2023 = vmul.f32 %v1704, %v1991
        %v2024 = vmul.f32 %v1707, %v1992
        %v2025 = vmul.f32 %v1709, %v1993
        %v2026 = vmul.f32 %v1712, %v1994
        %v2027 = vmul.f32 %v1714, %v1995
        %v2028 = vmul.f32 %v1717, %v1996
        %v2029 = vmul.f32 %v1719, %v1997
        %v2030 = vmul.f32 %v1722, %v1998
        %v2031 = vmul.f32 %v1724, %v1999
        %v2032 = vmul.f32 %v1727, %v2000
        %v2033 = vmul.f32 %v1729, %v2001
        %v2034 = vmul.f32 %v1732, %v2002
        %v2035 = vmul.f32 %v1734, %v2003
        %v2036 = vmul.f32 %v1737, %v2004
        %v2037 = vmul.f32 %v1739, %v2005
        %v2038 = vmul.f32 %v1742, %v2006
        %v2039 = vmul.f32 %v1744, %v2007
        %v2040 = vmul.f32 %v1747, %v2008
        %v2041 = vmul.f32 %v1749, %v2009
        %v2042 = vmul.f32 %v1752, %v2010
        %v2043 = vmul.f32 %v1754, %v2011
        %2044 = vadd.xlane.f32.xlu0 %v2012
        %v2045 = vpop.xlane.xlu0 %2044
        %2046 = vadd.xlane.f32.xlu0 %v2013
        %v2047 = vpop.xlane.xlu0 %2046
        %2048 = vadd.xlane.f32.xlu0 %v2014
        %v2049 = vpop.xlane.xlu0 %2048
        %2050 = vadd.xlane.f32.xlu0 %v2015
        %v2051 = vpop.xlane.xlu0 %2050
        %2052 = vadd.xlane.f32.xlu0 %v2016
        %v2053 = vpop.xlane.xlu0 %2052
        %2054 = vadd.xlane.f32.xlu0 %v2017
        %v2055 = vpop.xlane.xlu0 %2054
        %2056 = vadd.xlane.f32.xlu0 %v2018
        %v2057 = vpop.xlane.xlu0 %2056
        %2058 = vadd.xlane.f32.xlu0 %v2019
        %v2059 = vpop.xlane.xlu0 %2058
        %2060 = vadd.xlane.f32.xlu0 %v2020
        %v2061 = vpop.xlane.xlu0 %2060
        %2062 = vadd.xlane.f32.xlu0 %v2021
        %v2063 = vpop.xlane.xlu0 %2062
        %2064 = vadd.xlane.f32.xlu0 %v2022
        %v2065 = vpop.xlane.xlu0 %2064
        %2066 = vadd.xlane.f32.xlu0 %v2023
        %v2067 = vpop.xlane.xlu0 %2066
        %2068 = vadd.xlane.f32.xlu0 %v2024
        %v2069 = vpop.xlane.xlu0 %2068
        %2070 = vadd.xlane.f32.xlu0 %v2025
        %v2071 = vpop.xlane.xlu0 %2070
        %2072 = vadd.xlane.f32.xlu0 %v2026
        %v2073 = vpop.xlane.xlu0 %2072
        %2074 = vadd.xlane.f32.xlu0 %v2027
        %v2075 = vpop.xlane.xlu0 %2074
        %2076 = vadd.xlane.f32.xlu0 %v2028
        %v2077 = vpop.xlane.xlu0 %2076
        %2078 = vadd.xlane.f32.xlu0 %v2029
        %v2079 = vpop.xlane.xlu0 %2078
        %2080 = vadd.xlane.f32.xlu0 %v2030
        %v2081 = vpop.xlane.xlu0 %2080
        %2082 = vadd.xlane.f32.xlu0 %v2031
        %v2083 = vpop.xlane.xlu0 %2082
        %2084 = vadd.xlane.f32.xlu0 %v2032
        %v2085 = vpop.xlane.xlu0 %2084
        %2086 = vadd.xlane.f32.xlu0 %v2033
        %v2087 = vpop.xlane.xlu0 %2086
        %2088 = vadd.xlane.f32.xlu0 %v2034
        %v2089 = vpop.xlane.xlu0 %2088
        %2090 = vadd.xlane.f32.xlu0 %v2035
        %v2091 = vpop.xlane.xlu0 %2090
        %2092 = vadd.xlane.f32.xlu0 %v2036
        %v2093 = vpop.xlane.xlu0 %2092
        %2094 = vadd.xlane.f32.xlu0 %v2037
        %v2095 = vpop.xlane.xlu0 %2094
        %2096 = vadd.xlane.f32.xlu0 %v2038
        %v2097 = vpop.xlane.xlu0 %2096
        %2098 = vadd.xlane.f32.xlu0 %v2039
        %v2099 = vpop.xlane.xlu0 %2098
        %2100 = vadd.xlane.f32.xlu0 %v2040
        %v2101 = vpop.xlane.xlu0 %2100
        %2102 = vadd.xlane.f32.xlu0 %v2041
        %v2103 = vpop.xlane.xlu0 %2102
        %2104 = vadd.xlane.f32.xlu0 %v2042
        %v2105 = vpop.xlane.xlu0 %2104
        %2106 = vadd.xlane.f32.xlu0 %v2043
        %v2107 = vpop.xlane.xlu0 %2106
        %v2108 = vmul.f32 %v2045, %v942
        %v2109 = vmul.f32 %v2047, %v942
        %v2110 = vmul.f32 %v2049, %v942
        %v2111 = vmul.f32 %v2051, %v942
        %v2112 = vmul.f32 %v2053, %v942
        %v2113 = vmul.f32 %v2055, %v942
        %v2114 = vmul.f32 %v2057, %v942
        %v2115 = vmul.f32 %v2059, %v942
        %v2116 = vmul.f32 %v2061, %v942
        %v2117 = vmul.f32 %v2063, %v942
        %v2118 = vmul.f32 %v2065, %v942
        %v2119 = vmul.f32 %v2067, %v942
        %v2120 = vmul.f32 %v2069, %v942
        %v2121 = vmul.f32 %v2071, %v942
        %v2122 = vmul.f32 %v2073, %v942
        %v2123 = vmul.f32 %v2075, %v942
        %v2124 = vmul.f32 %v2077, %v942
        %v2125 = vmul.f32 %v2079, %v942
        %v2126 = vmul.f32 %v2081, %v942
        %v2127 = vmul.f32 %v2083, %v942
        %v2128 = vmul.f32 %v2085, %v942
        %v2129 = vmul.f32 %v2087, %v942
        %v2130 = vmul.f32 %v2089, %v942
        %v2131 = vmul.f32 %v2091, %v942
        %v2132 = vmul.f32 %v2093, %v942
        %v2133 = vmul.f32 %v2095, %v942
        %v2134 = vmul.f32 %v2097, %v942
        %v2135 = vmul.f32 %v2099, %v942
        %v2136 = vmul.f32 %v2101, %v942
        %v2137 = vmul.f32 %v2103, %v942
        %v2138 = vmul.f32 %v2105, %v942
        %v2139 = vmul.f32 %v2107, %v942
        %v2140 = vmul.f32 %v2012, %v2012
        %v2141 = vmul.f32 %v2013, %v2013
        %v2142 = vmul.f32 %v2014, %v2014
        %v2143 = vmul.f32 %v2015, %v2015
        %v2144 = vmul.f32 %v2016, %v2016
        %v2145 = vmul.f32 %v2017, %v2017
        %v2146 = vmul.f32 %v2018, %v2018
        %v2147 = vmul.f32 %v2019, %v2019
        %v2148 = vmul.f32 %v2020, %v2020
        %v2149 = vmul.f32 %v2021, %v2021
        %v2150 = vmul.f32 %v2022, %v2022
        %v2151 = vmul.f32 %v2023, %v2023
        %v2152 = vmul.f32 %v2024, %v2024
        %v2153 = vmul.f32 %v2025, %v2025
        %v2154 = vmul.f32 %v2026, %v2026
        %v2155 = vmul.f32 %v2027, %v2027
        %v2156 = vmul.f32 %v2028, %v2028
        %v2157 = vmul.f32 %v2029, %v2029
        %v2158 = vmul.f32 %v2030, %v2030
        %v2159 = vmul.f32 %v2031, %v2031
        %v2160 = vmul.f32 %v2032, %v2032
        %v2161 = vmul.f32 %v2033, %v2033
        %v2162 = vmul.f32 %v2034, %v2034
        %v2163 = vmul.f32 %v2035, %v2035
        %v2164 = vmul.f32 %v2036, %v2036
        %v2165 = vmul.f32 %v2037, %v2037
        %v2166 = vmul.f32 %v2038, %v2038
        %v2167 = vmul.f32 %v2039, %v2039
        %v2168 = vmul.f32 %v2040, %v2040
        %v2169 = vmul.f32 %v2041, %v2041
        %v2170 = vmul.f32 %v2042, %v2042
        %v2171 = vmul.f32 %v2043, %v2043
        %2172 = vadd.xlane.f32.xlu0 %v2140
        %v2173 = vpop.xlane.xlu0 %2172
        %2174 = vadd.xlane.f32.xlu0 %v2141
        %v2175 = vpop.xlane.xlu0 %2174
        %2176 = vadd.xlane.f32.xlu0 %v2142
        %v2177 = vpop.xlane.xlu0 %2176
        %2178 = vadd.xlane.f32.xlu0 %v2143
        %v2179 = vpop.xlane.xlu0 %2178
        %2180 = vadd.xlane.f32.xlu0 %v2144
        %v2181 = vpop.xlane.xlu0 %2180
        %2182 = vadd.xlane.f32.xlu0 %v2145
        %v2183 = vpop.xlane.xlu0 %2182
        %2184 = vadd.xlane.f32.xlu0 %v2146
        %v2185 = vpop.xlane.xlu0 %2184
        %2186 = vadd.xlane.f32.xlu0 %v2147
        %v2187 = vpop.xlane.xlu0 %2186
        %2188 = vadd.xlane.f32.xlu0 %v2148
        %v2189 = vpop.xlane.xlu0 %2188
        %2190 = vadd.xlane.f32.xlu0 %v2149
        %v2191 = vpop.xlane.xlu0 %2190
        %2192 = vadd.xlane.f32.xlu0 %v2150
        %v2193 = vpop.xlane.xlu0 %2192
        %2194 = vadd.xlane.f32.xlu0 %v2151
        %v2195 = vpop.xlane.xlu0 %2194
        %2196 = vadd.xlane.f32.xlu0 %v2152
        %v2197 = vpop.xlane.xlu0 %2196
        %2198 = vadd.xlane.f32.xlu0 %v2153
        %v2199 = vpop.xlane.xlu0 %2198
        %2200 = vadd.xlane.f32.xlu0 %v2154
        %v2201 = vpop.xlane.xlu0 %2200
        %2202 = vadd.xlane.f32.xlu0 %v2155
        %v2203 = vpop.xlane.xlu0 %2202
        %2204 = vadd.xlane.f32.xlu0 %v2156
        %v2205 = vpop.xlane.xlu0 %2204
        %2206 = vadd.xlane.f32.xlu0 %v2157
        %v2207 = vpop.xlane.xlu0 %2206
        %2208 = vadd.xlane.f32.xlu0 %v2158
        %v2209 = vpop.xlane.xlu0 %2208
        %2210 = vadd.xlane.f32.xlu0 %v2159
        %v2211 = vpop.xlane.xlu0 %2210
        %2212 = vadd.xlane.f32.xlu0 %v2160
        %v2213 = vpop.xlane.xlu0 %2212
        %2214 = vadd.xlane.f32.xlu0 %v2161
        %v2215 = vpop.xlane.xlu0 %2214
        %2216 = vadd.xlane.f32.xlu0 %v2162
        %v2217 = vpop.xlane.xlu0 %2216
        %2218 = vadd.xlane.f32.xlu0 %v2163
        %v2219 = vpop.xlane.xlu0 %2218
        %2220 = vadd.xlane.f32.xlu0 %v2164
        %v2221 = vpop.xlane.xlu0 %2220
        %2222 = vadd.xlane.f32.xlu0 %v2165
        %v2223 = vpop.xlane.xlu0 %2222
        %2224 = vadd.xlane.f32.xlu0 %v2166
        %v2225 = vpop.xlane.xlu0 %2224
        %2226 = vadd.xlane.f32.xlu0 %v2167
        %v2227 = vpop.xlane.xlu0 %2226
        %2228 = vadd.xlane.f32.xlu0 %v2168
        %v2229 = vpop.xlane.xlu0 %2228
        %2230 = vadd.xlane.f32.xlu0 %v2169
        %v2231 = vpop.xlane.xlu0 %2230
        %2232 = vadd.xlane.f32.xlu0 %v2170
        %v2233 = vpop.xlane.xlu0 %2232
        %2234 = vadd.xlane.f32.xlu0 %v2171
        %v2235 = vpop.xlane.xlu0 %2234
        %v2236 = vmul.f32 %v2173, %v942
        %v2237 = vmul.f32 %v2175, %v942
        %v2238 = vmul.f32 %v2177, %v942
        %v2239 = vmul.f32 %v2179, %v942
        %v2240 = vmul.f32 %v2181, %v942
        %v2241 = vmul.f32 %v2183, %v942
        %v2242 = vmul.f32 %v2185, %v942
        %v2243 = vmul.f32 %v2187, %v942
        %v2244 = vmul.f32 %v2189, %v942
        %v2245 = vmul.f32 %v2191, %v942
        %v2246 = vmul.f32 %v2193, %v942
        %v2247 = vmul.f32 %v2195, %v942
        %v2248 = vmul.f32 %v2197, %v942
        %v2249 = vmul.f32 %v2199, %v942
        %v2250 = vmul.f32 %v2201, %v942
        %v2251 = vmul.f32 %v2203, %v942
        %v2252 = vmul.f32 %v2205, %v942
        %v2253 = vmul.f32 %v2207, %v942
        %v2254 = vmul.f32 %v2209, %v942
        %v2255 = vmul.f32 %v2211, %v942
        %v2256 = vmul.f32 %v2213, %v942
        %v2257 = vmul.f32 %v2215, %v942
        %v2258 = vmul.f32 %v2217, %v942
        %v2259 = vmul.f32 %v2219, %v942
        %v2260 = vmul.f32 %v2221, %v942
        %v2261 = vmul.f32 %v2223, %v942
        %v2262 = vmul.f32 %v2225, %v942
        %v2263 = vmul.f32 %v2227, %v942
        %v2264 = vmul.f32 %v2229, %v942
        %v2265 = vmul.f32 %v2231, %v942
        %v2266 = vmul.f32 %v2233, %v942
        %v2267 = vmul.f32 %v2235, %v942
        %v2268 = vmul.f32 %v2108, %v2108
        %v2269 = vmul.f32 %v2109, %v2109
        %v2270 = vmul.f32 %v2110, %v2110
        %v2271 = vmul.f32 %v2111, %v2111
        %v2272 = vmul.f32 %v2112, %v2112
        %v2273 = vmul.f32 %v2113, %v2113
        %v2274 = vmul.f32 %v2114, %v2114
        %v2275 = vmul.f32 %v2115, %v2115
        %v2276 = vmul.f32 %v2116, %v2116
        %v2277 = vmul.f32 %v2117, %v2117
        %v2278 = vmul.f32 %v2118, %v2118
        %v2279 = vmul.f32 %v2119, %v2119
        %v2280 = vmul.f32 %v2120, %v2120
        %v2281 = vmul.f32 %v2121, %v2121
        %v2282 = vmul.f32 %v2122, %v2122
        %v2283 = vmul.f32 %v2123, %v2123
        %v2284 = vmul.f32 %v2124, %v2124
        %v2285 = vmul.f32 %v2125, %v2125
        %v2286 = vmul.f32 %v2126, %v2126
        %v2287 = vmul.f32 %v2127, %v2127
        %v2288 = vmul.f32 %v2128, %v2128
        %v2289 = vmul.f32 %v2129, %v2129
        %v2290 = vmul.f32 %v2130, %v2130
        %v2291 = vmul.f32 %v2131, %v2131
        %v2292 = vmul.f32 %v2132, %v2132
        %v2293 = vmul.f32 %v2133, %v2133
        %v2294 = vmul.f32 %v2134, %v2134
        %v2295 = vmul.f32 %v2135, %v2135
        %v2296 = vmul.f32 %v2136, %v2136
        %v2297 = vmul.f32 %v2137, %v2137
        %v2298 = vmul.f32 %v2138, %v2138
        %v2299 = vmul.f32 %v2139, %v2139
        %v2300 = vsub.f32 %v2236, %v2268
        %v2301 = vsub.f32 %v2237, %v2269
        %v2302 = vsub.f32 %v2238, %v2270
        %v2303 = vsub.f32 %v2239, %v2271
        %v2304 = vsub.f32 %v2240, %v2272
        %v2305 = vsub.f32 %v2241, %v2273
        %v2306 = vsub.f32 %v2242, %v2274
        %v2307 = vsub.f32 %v2243, %v2275
        %v2308 = vsub.f32 %v2244, %v2276
        %v2309 = vsub.f32 %v2245, %v2277
        %v2310 = vsub.f32 %v2246, %v2278
        %v2311 = vsub.f32 %v2247, %v2279
        %v2312 = vsub.f32 %v2248, %v2280
        %v2313 = vsub.f32 %v2249, %v2281
        %v2314 = vsub.f32 %v2250, %v2282
        %v2315 = vsub.f32 %v2251, %v2283
        %v2316 = vsub.f32 %v2252, %v2284
        %v2317 = vsub.f32 %v2253, %v2285
        %v2318 = vsub.f32 %v2254, %v2286
        %v2319 = vsub.f32 %v2255, %v2287
        %v2320 = vsub.f32 %v2256, %v2288
        %v2321 = vsub.f32 %v2257, %v2289
        %v2322 = vsub.f32 %v2258, %v2290
        %v2323 = vsub.f32 %v2259, %v2291
        %v2324 = vsub.f32 %v2260, %v2292
        %v2325 = vsub.f32 %v2261, %v2293
        %v2326 = vsub.f32 %v2262, %v2294
        %v2327 = vsub.f32 %v2263, %v2295
        %v2328 = vsub.f32 %v2264, %v2296
        %v2329 = vsub.f32 %v2265, %v2297
        %v2330 = vsub.f32 %v2266, %v2298
        %v2331 = vsub.f32 %v2267, %v2299
        %v2332 = vsub.f32 %v2012, %v2108
        %v2333 = vsub.f32 %v2013, %v2109
        %v2334 = vsub.f32 %v2014, %v2110
        %v2335 = vsub.f32 %v2015, %v2111
        %v2336 = vsub.f32 %v2016, %v2112
        %v2337 = vsub.f32 %v2017, %v2113
        %v2338 = vsub.f32 %v2018, %v2114
        %v2339 = vsub.f32 %v2019, %v2115
        %v2340 = vsub.f32 %v2020, %v2116
        %v2341 = vsub.f32 %v2021, %v2117
        %v2342 = vsub.f32 %v2022, %v2118
        %v2343 = vsub.f32 %v2023, %v2119
        %v2344 = vsub.f32 %v2024, %v2120
        %v2345 = vsub.f32 %v2025, %v2121
        %v2346 = vsub.f32 %v2026, %v2122
        %v2347 = vsub.f32 %v2027, %v2123
        %v2348 = vsub.f32 %v2028, %v2124
        %v2349 = vsub.f32 %v2029, %v2125
        %v2350 = vsub.f32 %v2030, %v2126
        %v2351 = vsub.f32 %v2031, %v2127
        %v2352 = vsub.f32 %v2032, %v2128
        %v2353 = vsub.f32 %v2033, %v2129
        %v2354 = vsub.f32 %v2034, %v2130
        %v2355 = vsub.f32 %v2035, %v2131
        %v2356 = vsub.f32 %v2036, %v2132
        %v2357 = vsub.f32 %v2037, %v2133
        %v2358 = vsub.f32 %v2038, %v2134
        %v2359 = vsub.f32 %v2039, %v2135
        %v2360 = vsub.f32 %v2040, %v2136
        %v2361 = vsub.f32 %v2041, %v2137
        %v2362 = vsub.f32 %v2042, %v2138
        %v2363 = vsub.f32 %v2043, %v2139
        %v2364 = vadd.f32 %v2300, 1e-05
        %v2365 = vadd.f32 %v2301, 1e-05
        %v2366 = vadd.f32 %v2302, 1e-05
        %v2367 = vadd.f32 %v2303, 1e-05
        %v2368 = vadd.f32 %v2304, 1e-05
        %v2369 = vadd.f32 %v2305, 1e-05
        %v2370 = vadd.f32 %v2306, 1e-05
        %v2371 = vadd.f32 %v2307, 1e-05
        %v2372 = vadd.f32 %v2308, 1e-05
        %v2373 = vadd.f32 %v2309, 1e-05
        %v2374 = vadd.f32 %v2310, 1e-05
        %v2375 = vadd.f32 %v2311, 1e-05
        %v2376 = vadd.f32 %v2312, 1e-05
        %v2377 = vadd.f32 %v2313, 1e-05
        %v2378 = vadd.f32 %v2314, 1e-05
        %v2379 = vadd.f32 %v2315, 1e-05
        %v2380 = vadd.f32 %v2316, 1e-05
        %v2381 = vadd.f32 %v2317, 1e-05
        %v2382 = vadd.f32 %v2318, 1e-05
        %v2383 = vadd.f32 %v2319, 1e-05
        %v2384 = vadd.f32 %v2320, 1e-05
        %v2385 = vadd.f32 %v2321, 1e-05
        %v2386 = vadd.f32 %v2322, 1e-05
        %v2387 = vadd.f32 %v2323, 1e-05
        %v2388 = vadd.f32 %v2324, 1e-05
        %v2389 = vadd.f32 %v2325, 1e-05
        %v2390 = vadd.f32 %v2326, 1e-05
        %v2391 = vadd.f32 %v2327, 1e-05
        %v2392 = vadd.f32 %v2328, 1e-05
        %v2393 = vadd.f32 %v2329, 1e-05
        %v2394 = vadd.f32 %v2330, 1e-05
        %v2395 = vadd.f32 %v2331, 1e-05
        %v2396 = vrsqrt.pop %v2364
        %v2397 = vmul.f32 %v2396, %v2364
        %v2398 = vmul.f32 %v2397, %v2396
        %v2399 = vmul.f32 0.5, %v2398
        %v2400 = vsub.f32 1.5, %v2399
        %v2401 = vmul.f32 %v2396, %v2400
        %vm2402 = vweird.f32 %v2364
        %vm2403 = vweird.f32 %v2396
        %vm2404 = vmor %vm2402, %vm2403
        %v2405 = vsel %vm2404, %v2396, %v2401
        %v2406 = vrsqrt.pop %v2365
        %v2407 = vmul.f32 %v2406, %v2365
        %v2408 = vmul.f32 %v2407, %v2406
        %v2409 = vmul.f32 0.5, %v2408
        %v2410 = vsub.f32 1.5, %v2409
        %v2411 = vmul.f32 %v2406, %v2410
        %vm2412 = vweird.f32 %v2365
        %vm2413 = vweird.f32 %v2406
        %vm2414 = vmor %vm2412, %vm2413
        %v2415 = vsel %vm2414, %v2406, %v2411
        %v2416 = vrsqrt.pop %v2366
        %v2417 = vmul.f32 %v2416, %v2366
        %v2418 = vmul.f32 %v2417, %v2416
        %v2419 = vmul.f32 0.5, %v2418
        %v2420 = vsub.f32 1.5, %v2419
        %v2421 = vmul.f32 %v2416, %v2420
        %vm2422 = vweird.f32 %v2366
        %vm2423 = vweird.f32 %v2416
        %vm2424 = vmor %vm2422, %vm2423
        %v2425 = vsel %vm2424, %v2416, %v2421
        %v2426 = vrsqrt.pop %v2367
        %v2427 = vmul.f32 %v2426, %v2367
        %v2428 = vmul.f32 %v2427, %v2426
        %v2429 = vmul.f32 0.5, %v2428
        %v2430 = vsub.f32 1.5, %v2429
        %v2431 = vmul.f32 %v2426, %v2430
        %vm2432 = vweird.f32 %v2367
        %vm2433 = vweird.f32 %v2426
        %vm2434 = vmor %vm2432, %vm2433
        %v2435 = vsel %vm2434, %v2426, %v2431
        %v2436 = vrsqrt.pop %v2368
        %v2437 = vmul.f32 %v2436, %v2368
        %v2438 = vmul.f32 %v2437, %v2436
        %v2439 = vmul.f32 0.5, %v2438
        %v2440 = vsub.f32 1.5, %v2439
        %v2441 = vmul.f32 %v2436, %v2440
        %vm2442 = vweird.f32 %v2368
        %vm2443 = vweird.f32 %v2436
        %vm2444 = vmor %vm2442, %vm2443
        %v2445 = vsel %vm2444, %v2436, %v2441
        %v2446 = vrsqrt.pop %v2369
        %v2447 = vmul.f32 %v2446, %v2369
        %v2448 = vmul.f32 %v2447, %v2446
        %v2449 = vmul.f32 0.5, %v2448
        %v2450 = vsub.f32 1.5, %v2449
        %v2451 = vmul.f32 %v2446, %v2450
        %vm2452 = vweird.f32 %v2369
        %vm2453 = vweird.f32 %v2446
        %vm2454 = vmor %vm2452, %vm2453
        %v2455 = vsel %vm2454, %v2446, %v2451
        %v2456 = vrsqrt.pop %v2370
        %v2457 = vmul.f32 %v2456, %v2370
        %v2458 = vmul.f32 %v2457, %v2456
        %v2459 = vmul.f32 0.5, %v2458
        %v2460 = vsub.f32 1.5, %v2459
        %v2461 = vmul.f32 %v2456, %v2460
        %vm2462 = vweird.f32 %v2370
        %vm2463 = vweird.f32 %v2456
        %vm2464 = vmor %vm2462, %vm2463
        %v2465 = vsel %vm2464, %v2456, %v2461
        %v2466 = vrsqrt.pop %v2371
        %v2467 = vmul.f32 %v2466, %v2371
        %v2468 = vmul.f32 %v2467, %v2466
        %v2469 = vmul.f32 0.5, %v2468
        %v2470 = vsub.f32 1.5, %v2469
        %v2471 = vmul.f32 %v2466, %v2470
        %vm2472 = vweird.f32 %v2371
        %vm2473 = vweird.f32 %v2466
        %vm2474 = vmor %vm2472, %vm2473
        %v2475 = vsel %vm2474, %v2466, %v2471
        %v2476 = vrsqrt.pop %v2372
        %v2477 = vmul.f32 %v2476, %v2372
        %v2478 = vmul.f32 %v2477, %v2476
        %v2479 = vmul.f32 0.5, %v2478
        %v2480 = vsub.f32 1.5, %v2479
        %v2481 = vmul.f32 %v2476, %v2480
        %vm2482 = vweird.f32 %v2372
        %vm2483 = vweird.f32 %v2476
        %vm2484 = vmor %vm2482, %vm2483
        %v2485 = vsel %vm2484, %v2476, %v2481
        %v2486 = vrsqrt.pop %v2373
        %v2487 = vmul.f32 %v2486, %v2373
        %v2488 = vmul.f32 %v2487, %v2486
        %v2489 = vmul.f32 0.5, %v2488
        %v2490 = vsub.f32 1.5, %v2489
        %v2491 = vmul.f32 %v2486, %v2490
        %vm2492 = vweird.f32 %v2373
        %vm2493 = vweird.f32 %v2486
        %vm2494 = vmor %vm2492, %vm2493
        %v2495 = vsel %vm2494, %v2486, %v2491
        %v2496 = vrsqrt.pop %v2374
        %v2497 = vmul.f32 %v2496, %v2374
        %v2498 = vmul.f32 %v2497, %v2496
        %v2499 = vmul.f32 0.5, %v2498
        %v2500 = vsub.f32 1.5, %v2499
        %v2501 = vmul.f32 %v2496, %v2500
        %vm2502 = vweird.f32 %v2374
        %vm2503 = vweird.f32 %v2496
        %vm2504 = vmor %vm2502, %vm2503
        %v2505 = vsel %vm2504, %v2496, %v2501
        %v2506 = vrsqrt.pop %v2375
        %v2507 = vmul.f32 %v2506, %v2375
        %v2508 = vmul.f32 %v2507, %v2506
        %v2509 = vmul.f32 0.5, %v2508
        %v2510 = vsub.f32 1.5, %v2509
        %v2511 = vmul.f32 %v2506, %v2510
        %vm2512 = vweird.f32 %v2375
        %vm2513 = vweird.f32 %v2506
        %vm2514 = vmor %vm2512, %vm2513
        %v2515 = vsel %vm2514, %v2506, %v2511
        %v2516 = vrsqrt.pop %v2376
        %v2517 = vmul.f32 %v2516, %v2376
        %v2518 = vmul.f32 %v2517, %v2516
        %v2519 = vmul.f32 0.5, %v2518
        %v2520 = vsub.f32 1.5, %v2519
        %v2521 = vmul.f32 %v2516, %v2520
        %vm2522 = vweird.f32 %v2376
        %vm2523 = vweird.f32 %v2516
        %vm2524 = vmor %vm2522, %vm2523
        %v2525 = vsel %vm2524, %v2516, %v2521
        %v2526 = vrsqrt.pop %v2377
        %v2527 = vmul.f32 %v2526, %v2377
        %v2528 = vmul.f32 %v2527, %v2526
        %v2529 = vmul.f32 0.5, %v2528
        %v2530 = vsub.f32 1.5, %v2529
        %v2531 = vmul.f32 %v2526, %v2530
        %vm2532 = vweird.f32 %v2377
        %vm2533 = vweird.f32 %v2526
        %vm2534 = vmor %vm2532, %vm2533
        %v2535 = vsel %vm2534, %v2526, %v2531
        %v2536 = vrsqrt.pop %v2378
        %v2537 = vmul.f32 %v2536, %v2378
        %v2538 = vmul.f32 %v2537, %v2536
        %v2539 = vmul.f32 0.5, %v2538
        %v2540 = vsub.f32 1.5, %v2539
        %v2541 = vmul.f32 %v2536, %v2540
        %vm2542 = vweird.f32 %v2378
        %vm2543 = vweird.f32 %v2536
        %vm2544 = vmor %vm2542, %vm2543
        %v2545 = vsel %vm2544, %v2536, %v2541
        %v2546 = vrsqrt.pop %v2379
        %v2547 = vmul.f32 %v2546, %v2379
        %v2548 = vmul.f32 %v2547, %v2546
        %v2549 = vmul.f32 0.5, %v2548
        %v2550 = vsub.f32 1.5, %v2549
        %v2551 = vmul.f32 %v2546, %v2550
        %vm2552 = vweird.f32 %v2379
        %vm2553 = vweird.f32 %v2546
        %vm2554 = vmor %vm2552, %vm2553
        %v2555 = vsel %vm2554, %v2546, %v2551
        %v2556 = vrsqrt.pop %v2380
        %v2557 = vmul.f32 %v2556, %v2380
        %v2558 = vmul.f32 %v2557, %v2556
        %v2559 = vmul.f32 0.5, %v2558
        %v2560 = vsub.f32 1.5, %v2559
        %v2561 = vmul.f32 %v2556, %v2560
        %vm2562 = vweird.f32 %v2380
        %vm2563 = vweird.f32 %v2556
        %vm2564 = vmor %vm2562, %vm2563
        %v2565 = vsel %vm2564, %v2556, %v2561
        %v2566 = vrsqrt.pop %v2381
        %v2567 = vmul.f32 %v2566, %v2381
        %v2568 = vmul.f32 %v2567, %v2566
        %v2569 = vmul.f32 0.5, %v2568
        %v2570 = vsub.f32 1.5, %v2569
        %v2571 = vmul.f32 %v2566, %v2570
        %vm2572 = vweird.f32 %v2381
        %vm2573 = vweird.f32 %v2566
        %vm2574 = vmor %vm2572, %vm2573
        %v2575 = vsel %vm2574, %v2566, %v2571
        %v2576 = vrsqrt.pop %v2382
        %v2577 = vmul.f32 %v2576, %v2382
        %v2578 = vmul.f32 %v2577, %v2576
        %v2579 = vmul.f32 0.5, %v2578
        %v2580 = vsub.f32 1.5, %v2579
        %v2581 = vmul.f32 %v2576, %v2580
        %vm2582 = vweird.f32 %v2382
        %vm2583 = vweird.f32 %v2576
        %vm2584 = vmor %vm2582, %vm2583
        %v2585 = vsel %vm2584, %v2576, %v2581
        %v2586 = vrsqrt.pop %v2383
        %v2587 = vmul.f32 %v2586, %v2383
        %v2588 = vmul.f32 %v2587, %v2586
        %v2589 = vmul.f32 0.5, %v2588
        %v2590 = vsub.f32 1.5, %v2589
        %v2591 = vmul.f32 %v2586, %v2590
        %vm2592 = vweird.f32 %v2383
        %vm2593 = vweird.f32 %v2586
        %vm2594 = vmor %vm2592, %vm2593
        %v2595 = vsel %vm2594, %v2586, %v2591
        %v2596 = vrsqrt.pop %v2384
        %v2597 = vmul.f32 %v2596, %v2384
        %v2598 = vmul.f32 %v2597, %v2596
        %v2599 = vmul.f32 0.5, %v2598
        %v2600 = vsub.f32 1.5, %v2599
        %v2601 = vmul.f32 %v2596, %v2600
        %vm2602 = vweird.f32 %v2384
        %vm2603 = vweird.f32 %v2596
        %vm2604 = vmor %vm2602, %vm2603
        %v2605 = vsel %vm2604, %v2596, %v2601
        %v2606 = vrsqrt.pop %v2385
        %v2607 = vmul.f32 %v2606, %v2385
        %v2608 = vmul.f32 %v2607, %v2606
        %v2609 = vmul.f32 0.5, %v2608
        %v2610 = vsub.f32 1.5, %v2609
        %v2611 = vmul.f32 %v2606, %v2610
        %vm2612 = vweird.f32 %v2385
        %vm2613 = vweird.f32 %v2606
        %vm2614 = vmor %vm2612, %vm2613
        %v2615 = vsel %vm2614, %v2606, %v2611
        %v2616 = vrsqrt.pop %v2386
        %v2617 = vmul.f32 %v2616, %v2386
        %v2618 = vmul.f32 %v2617, %v2616
        %v2619 = vmul.f32 0.5, %v2618
        %v2620 = vsub.f32 1.5, %v2619
        %v2621 = vmul.f32 %v2616, %v2620
        %vm2622 = vweird.f32 %v2386
        %vm2623 = vweird.f32 %v2616
        %vm2624 = vmor %vm2622, %vm2623
        %v2625 = vsel %vm2624, %v2616, %v2621
        %v2626 = vrsqrt.pop %v2387
        %v2627 = vmul.f32 %v2626, %v2387
        %v2628 = vmul.f32 %v2627, %v2626
        %v2629 = vmul.f32 0.5, %v2628
        %v2630 = vsub.f32 1.5, %v2629
        %v2631 = vmul.f32 %v2626, %v2630
        %vm2632 = vweird.f32 %v2387
        %vm2633 = vweird.f32 %v2626
        %vm2634 = vmor %vm2632, %vm2633
        %v2635 = vsel %vm2634, %v2626, %v2631
        %v2636 = vrsqrt.pop %v2388
        %v2637 = vmul.f32 %v2636, %v2388
        %v2638 = vmul.f32 %v2637, %v2636
        %v2639 = vmul.f32 0.5, %v2638
        %v2640 = vsub.f32 1.5, %v2639
        %v2641 = vmul.f32 %v2636, %v2640
        %vm2642 = vweird.f32 %v2388
        %vm2643 = vweird.f32 %v2636
        %vm2644 = vmor %vm2642, %vm2643
        %v2645 = vsel %vm2644, %v2636, %v2641
        %v2646 = vrsqrt.pop %v2389
        %v2647 = vmul.f32 %v2646, %v2389
        %v2648 = vmul.f32 %v2647, %v2646
        %v2649 = vmul.f32 0.5, %v2648
        %v2650 = vsub.f32 1.5, %v2649
        %v2651 = vmul.f32 %v2646, %v2650
        %vm2652 = vweird.f32 %v2389
        %vm2653 = vweird.f32 %v2646
        %vm2654 = vmor %vm2652, %vm2653
        %v2655 = vsel %vm2654, %v2646, %v2651
        %v2656 = vrsqrt.pop %v2390
        %v2657 = vmul.f32 %v2656, %v2390
        %v2658 = vmul.f32 %v2657, %v2656
        %v2659 = vmul.f32 0.5, %v2658
        %v2660 = vsub.f32 1.5, %v2659
        %v2661 = vmul.f32 %v2656, %v2660
        %vm2662 = vweird.f32 %v2390
        %vm2663 = vweird.f32 %v2656
        %vm2664 = vmor %vm2662, %vm2663
        %v2665 = vsel %vm2664, %v2656, %v2661
        %v2666 = vrsqrt.pop %v2391
        %v2667 = vmul.f32 %v2666, %v2391
        %v2668 = vmul.f32 %v2667, %v2666
        %v2669 = vmul.f32 0.5, %v2668
        %v2670 = vsub.f32 1.5, %v2669
        %v2671 = vmul.f32 %v2666, %v2670
        %vm2672 = vweird.f32 %v2391
        %vm2673 = vweird.f32 %v2666
        %vm2674 = vmor %vm2672, %vm2673
        %v2675 = vsel %vm2674, %v2666, %v2671
        %v2676 = vrsqrt.pop %v2392
        %v2677 = vmul.f32 %v2676, %v2392
        %v2678 = vmul.f32 %v2677, %v2676
        %v2679 = vmul.f32 0.5, %v2678
        %v2680 = vsub.f32 1.5, %v2679
        %v2681 = vmul.f32 %v2676, %v2680
        %vm2682 = vweird.f32 %v2392
        %vm2683 = vweird.f32 %v2676
        %vm2684 = vmor %vm2682, %vm2683
        %v2685 = vsel %vm2684, %v2676, %v2681
        %v2686 = vrsqrt.pop %v2393
        %v2687 = vmul.f32 %v2686, %v2393
        %v2688 = vmul.f32 %v2687, %v2686
        %v2689 = vmul.f32 0.5, %v2688
        %v2690 = vsub.f32 1.5, %v2689
        %v2691 = vmul.f32 %v2686, %v2690
        %vm2692 = vweird.f32 %v2393
        %vm2693 = vweird.f32 %v2686
        %vm2694 = vmor %vm2692, %vm2693
        %v2695 = vsel %vm2694, %v2686, %v2691
        %v2696 = vrsqrt.pop %v2394
        %v2697 = vmul.f32 %v2696, %v2394
        %v2698 = vmul.f32 %v2697, %v2696
        %v2699 = vmul.f32 0.5, %v2698
        %v2700 = vsub.f32 1.5, %v2699
        %v2701 = vmul.f32 %v2696, %v2700
        %vm2702 = vweird.f32 %v2394
        %vm2703 = vweird.f32 %v2696
        %vm2704 = vmor %vm2702, %vm2703
        %v2705 = vsel %vm2704, %v2696, %v2701
        %v2706 = vrsqrt.pop %v2395
        %v2707 = vmul.f32 %v2706, %v2395
        %v2708 = vmul.f32 %v2707, %v2706
        %v2709 = vmul.f32 0.5, %v2708
        %v2710 = vsub.f32 1.5, %v2709
        %v2711 = vmul.f32 %v2706, %v2710
        %vm2712 = vweird.f32 %v2395
        %vm2713 = vweird.f32 %v2706
        %vm2714 = vmor %vm2712, %vm2713
        %v2715 = vsel %vm2714, %v2706, %v2711
        %v2716 = vmul.f32 %v2332, %v2405
        %v2717 = vmul.f32 %v2333, %v2415
        %v2718 = vmul.f32 %v2334, %v2425
        %v2719 = vmul.f32 %v2335, %v2435
        %v2720 = vmul.f32 %v2336, %v2445
        %v2721 = vmul.f32 %v2337, %v2455
        %v2722 = vmul.f32 %v2338, %v2465
        %v2723 = vmul.f32 %v2339, %v2475
        %v2724 = vmul.f32 %v2340, %v2485
        %v2725 = vmul.f32 %v2341, %v2495
        %v2726 = vmul.f32 %v2342, %v2505
        %v2727 = vmul.f32 %v2343, %v2515
        %v2728 = vmul.f32 %v2344, %v2525
        %v2729 = vmul.f32 %v2345, %v2535
        %v2730 = vmul.f32 %v2346, %v2545
        %v2731 = vmul.f32 %v2347, %v2555
        %v2732 = vmul.f32 %v2348, %v2565
        %v2733 = vmul.f32 %v2349, %v2575
        %v2734 = vmul.f32 %v2350, %v2585
        %v2735 = vmul.f32 %v2351, %v2595
        %v2736 = vmul.f32 %v2352, %v2605
        %v2737 = vmul.f32 %v2353, %v2615
        %v2738 = vmul.f32 %v2354, %v2625
        %v2739 = vmul.f32 %v2355, %v2635
        %v2740 = vmul.f32 %v2356, %v2645
        %v2741 = vmul.f32 %v2357, %v2655
        %v2742 = vmul.f32 %v2358, %v2665
        %v2743 = vmul.f32 %v2359, %v2675
        %v2744 = vmul.f32 %v2360, %v2685
        %v2745 = vmul.f32 %v2361, %v2695
        %v2746 = vmul.f32 %v2362, %v2705
        %v2747 = vmul.f32 %v2363, %v2715
        %v2748 = vpack.c.bf16 %v2717, %v2716
        %v2749 = vpack.c.bf16 %v2719, %v2718
        %v2750 = vpack.c.bf16 %v2721, %v2720
        %v2751 = vpack.c.bf16 %v2723, %v2722
        %v2752 = vpack.c.bf16 %v2725, %v2724
        %v2753 = vpack.c.bf16 %v2727, %v2726
        %v2754 = vpack.c.bf16 %v2729, %v2728
        %v2755 = vpack.c.bf16 %v2731, %v2730
        %v2756 = vpack.c.bf16 %v2733, %v2732
        %v2757 = vpack.c.bf16 %v2735, %v2734
        %v2758 = vpack.c.bf16 %v2737, %v2736
        %v2759 = vpack.c.bf16 %v2739, %v2738
        %v2760 = vpack.c.bf16 %v2741, %v2740
        %v2761 = vpack.c.bf16 %v2743, %v2742
        %v2762 = vpack.c.bf16 %v2745, %v2744
        %v2763 = vpack.c.bf16 %v2747, %v2746
        %v2764 = vld [vmem:[%s5] sm:$0xf]
        %v2765 = vld [vmem:[%s5 + $0x4] sm:$0xf]
        %v2766 = vld [vmem:[%s5 + $0x8] sm:$0xf]
        %v2767 = vld [vmem:[%s5 + $0xc] sm:$0xf]
        %v2768 = vld [vmem:[%s5 + $0x10] sm:$0xf]
        %v2769 = vld [vmem:[%s5 + $0x14] sm:$0xf]
        %v2770 = vld [vmem:[%s5 + $0x18] sm:$0xf]
        %v2771 = vld [vmem:[%s5 + $0x1c] sm:$0xf]
        %v2772 = vld [vmem:[%s5 + $0x20] sm:$0xf]
        %v2773 = vld [vmem:[%s5 + $0x24] sm:$0xf]
        %v2774 = vld [vmem:[%s5 + $0x28] sm:$0xf]
        %v2775 = vld [vmem:[%s5 + $0x2c] sm:$0xf]
        %v2776 = vld [vmem:[%s5 + $0x30] sm:$0xf]
        %v2777 = vld [vmem:[%s5 + $0x34] sm:$0xf]
        %v2778 = vld [vmem:[%s5 + $0x38] sm:$0xf]
        %v2779 = vld [vmem:[%s5 + $0x3c] sm:$0xf]
        %v2780 = vld [vmem:[%s6] sm:$0x1]
        %v2782 = vperm.slane %v2780, 0
        %v2800 = vunpack.c.l.b16 %v2764
        %v2801 = vunpack.c.l.b16 %v2765
        %v2802 = vunpack.c.l.b16 %v2766
        %v2803 = vunpack.c.l.b16 %v2767
        %v2804 = vunpack.c.l.b16 %v2768
        %v2805 = vunpack.c.l.b16 %v2769
        %v2806 = vunpack.c.l.b16 %v2770
        %v2807 = vunpack.c.l.b16 %v2771
        %v2808 = vunpack.c.l.b16 %v2772
        %v2809 = vunpack.c.l.b16 %v2773
        %v2810 = vunpack.c.l.b16 %v2774
        %v2811 = vunpack.c.l.b16 %v2775
        %v2812 = vunpack.c.l.b16 %v2776
        %v2813 = vunpack.c.l.b16 %v2777
        %v2814 = vunpack.c.l.b16 %v2778
        %v2815 = vunpack.c.l.b16 %v2779
        %v2816 = vpack.c.b16 %v2801, %v2800
        %v2817 = vpack.c.b16 %v2803, %v2802
        %v2818 = vpack.c.b16 %v2805, %v2804
        %v2819 = vpack.c.b16 %v2807, %v2806
        %v2820 = vpack.c.b16 %v2809, %v2808
        %v2821 = vpack.c.b16 %v2811, %v2810
        %v2822 = vpack.c.b16 %v2813, %v2812
        %v2823 = vpack.c.b16 %v2815, %v2814
        %2832 = vmatpush.bf16.msra.mxu0 %v2823
        %2833 = vmatpush.bf16.msra.mxu0 %v2822
        %2834 = vmatpush.bf16.msra.mxu0 %v2821
        %2835 = vmatpush.bf16.msra.mxu0 %v2820
        %2836 = vmatpush.bf16.msra.mxu0 %v2819
        %2837 = vmatpush.bf16.msra.mxu0 %v2818
        %2838 = vmatpush.bf16.msra.mxu0 %v2817
        %2839 = vmatpush.bf16.msra.mxu0 %v2816
        %2840 = vmatmul.bf16.gmra.mxu0 %v2748
        %v2841 = vpop.f32.mrf.mxu0
        %v2842 = vadd.f32 %v2782, %v2841
        %v2843 = vpop.f32.mrf.mxu0
        %v2844 = vadd.f32 %v2782, %v2843
        %2845 = vmatmul.bf16.gmra.mxu0 %v2749
        %v2846 = vpop.f32.mrf.mxu0
        %v2847 = vadd.f32 %v2782, %v2846
        %v2848 = vpop.f32.mrf.mxu0
        %v2849 = vadd.f32 %v2782, %v2848
        %2850 = vmatmul.bf16.gmra.mxu0 %v2750
        %v2851 = vpop.f32.mrf.mxu0
        %v2852 = vadd.f32 %v2782, %v2851
        %v2853 = vpop.f32.mrf.mxu0
        %v2854 = vadd.f32 %v2782, %v2853
        %2855 = vmatmul.bf16.gmra.mxu0 %v2751
        %v2856 = vpop.f32.mrf.mxu0
        %v2857 = vadd.f32 %v2782, %v2856
        %v2858 = vpop.f32.mrf.mxu0
        %v2859 = vadd.f32 %v2782, %v2858
        %2860 = vmatmul.bf16.gmra.mxu0 %v2752
        %v2861 = vpop.f32.mrf.mxu0
        %v2862 = vadd.f32 %v2782, %v2861
        %v2863 = vpop.f32.mrf.mxu0
        %v2864 = vadd.f32 %v2782, %v2863
        %2865 = vmatmul.bf16.gmra.mxu0 %v2753
        %v2866 = vpop.f32.mrf.mxu0
        %v2867 = vadd.f32 %v2782, %v2866
        %v2868 = vpop.f32.mrf.mxu0
        %v2869 = vadd.f32 %v2782, %v2868
        %2870 = vmatmul.bf16.gmra.mxu0 %v2754
        %v2871 = vpop.f32.mrf.mxu0
        %v2872 = vadd.f32 %v2782, %v2871
        %v2873 = vpop.f32.mrf.mxu0
        %v2874 = vadd.f32 %v2782, %v2873
        %2875 = vmatmul.bf16.gmra.mxu0 %v2755
        %v2876 = vpop.f32.mrf.mxu0
        %v2877 = vadd.f32 %v2782, %v2876
        %v2878 = vpop.f32.mrf.mxu0
        %v2879 = vadd.f32 %v2782, %v2878
        %2880 = vmatmul.bf16.gmra.mxu0 %v2756
        %v2881 = vpop.f32.mrf.mxu0
        %v2882 = vadd.f32 %v2782, %v2881
        %v2883 = vpop.f32.mrf.mxu0
        %v2884 = vadd.f32 %v2782, %v2883
        %2885 = vmatmul.bf16.gmra.mxu0 %v2757
        %v2886 = vpop.f32.mrf.mxu0
        %v2887 = vadd.f32 %v2782, %v2886
        %v2888 = vpop.f32.mrf.mxu0
        %v2889 = vadd.f32 %v2782, %v2888
        %2890 = vmatmul.bf16.gmra.mxu0 %v2758
        %v2891 = vpop.f32.mrf.mxu0
        %v2892 = vadd.f32 %v2782, %v2891
        %v2893 = vpop.f32.mrf.mxu0
        %v2894 = vadd.f32 %v2782, %v2893
        %2895 = vmatmul.bf16.gmra.mxu0 %v2759
        %v2896 = vpop.f32.mrf.mxu0
        %v2897 = vadd.f32 %v2782, %v2896
        %v2898 = vpop.f32.mrf.mxu0
        %v2899 = vadd.f32 %v2782, %v2898
        %2900 = vmatmul.bf16.gmra.mxu0 %v2760
        %v2901 = vpop.f32.mrf.mxu0
        %v2902 = vadd.f32 %v2782, %v2901
        %v2903 = vpop.f32.mrf.mxu0
        %v2904 = vadd.f32 %v2782, %v2903
        %2905 = vmatmul.bf16.gmra.mxu0 %v2761
        %v2906 = vpop.f32.mrf.mxu0
        %v2907 = vadd.f32 %v2782, %v2906
        %v2908 = vpop.f32.mrf.mxu0
        %v2909 = vadd.f32 %v2782, %v2908
        %2910 = vmatmul.bf16.gmra.mxu0 %v2762
        %v2911 = vpop.f32.mrf.mxu0
        %v2912 = vadd.f32 %v2782, %v2911
        %v2913 = vpop.f32.mrf.mxu0
        %v2914 = vadd.f32 %v2782, %v2913
        %2915 = vmatmul.bf16.gmra.mxu0 %v2763
        %v2916 = vpop.f32.mrf.mxu0
        %v2917 = vadd.f32 %v2782, %v2916
        %v2918 = vpop.f32.mrf.mxu0
        %v2919 = vadd.f32 %v2782, %v2918
        %2920 = vdwg.mxu0
        %2921 = vst [vmem:[%s295] sm:$0xff] %v2842
        %2922 = vst [vmem:[%s295 + $0x8] sm:$0xff] %v2844
        %2923 = vst [vmem:[%s295 + $0x10] sm:$0xff] %v2847
        %2924 = vst [vmem:[%s295 + $0x18] sm:$0xff] %v2849
        %2925 = vst [vmem:[%s295 + $0x20] sm:$0xff] %v2852
        %2926 = vst [vmem:[%s295 + $0x28] sm:$0xff] %v2854
        %2927 = vst [vmem:[%s295 + $0x30] sm:$0xff] %v2857
        %2928 = vst [vmem:[%s295 + $0x38] sm:$0xff] %v2859
        %2929 = vst [vmem:[%s295 + $0x40] sm:$0xff] %v2862
        %2930 = vst [vmem:[%s295 + $0x48] sm:$0xff] %v2864
        %2931 = vst [vmem:[%s295 + $0x50] sm:$0xff] %v2867
        %2932 = vst [vmem:[%s295 + $0x58] sm:$0xff] %v2869
        %2933 = vst [vmem:[%s295 + $0x60] sm:$0xff] %v2872
        %2934 = vst [vmem:[%s295 + $0x68] sm:$0xff] %v2874
        %2935 = vst [vmem:[%s295 + $0x70] sm:$0xff] %v2877
        %2936 = vst [vmem:[%s295 + $0x78] sm:$0xff] %v2879
        %2937 = vst [vmem:[%s295 + $0x80] sm:$0xff] %v2882
        %2938 = vst [vmem:[%s295 + $0x88] sm:$0xff] %v2884
        %2939 = vst [vmem:[%s295 + $0x90] sm:$0xff] %v2887
        %2940 = vst [vmem:[%s295 + $0x98] sm:$0xff] %v2889
        %2941 = vst [vmem:[%s295 + $0xa0] sm:$0xff] %v2892
        %2942 = vst [vmem:[%s295 + $0xa8] sm:$0xff] %v2894
        %2943 = vst [vmem:[%s295 + $0xb0] sm:$0xff] %v2897
        %2944 = vst [vmem:[%s295 + $0xb8] sm:$0xff] %v2899
        %2945 = vst [vmem:[%s295 + $0xc0] sm:$0xff] %v2902
        %2946 = vst [vmem:[%s295 + $0xc8] sm:$0xff] %v2904
        %2947 = vst [vmem:[%s295 + $0xd0] sm:$0xff] %v2907
        %2948 = vst [vmem:[%s295 + $0xd8] sm:$0xff] %v2909
        %2949 = vst [vmem:[%s295 + $0xe0] sm:$0xff] %v2912
        %2950 = vst [vmem:[%s295 + $0xe8] sm:$0xff] %v2914
        %2951 = vst [vmem:[%s295 + $0xf0] sm:$0xff] %v2917
        %2952 = vst [vmem:[%s295 + $0xf8] sm:$0xff] %v2919
        %s2953 = smul.u32 32, %s19
        %p2954 = scmp.lt.s32.totalorder %s2953, 63
        %s2955 = scalar_select %p2954, %s2953, 63
        %s2956 = smul.addr %s2955, 8
        %s2957 = scalar_lea.vmem %s7, %s2956
        // Predicated region
        $region53: #{patch_embedding_proj.1} parent=47 // pred_check
          %p2958 = pneg %p189
        $region54: #{patch_embedding_proj.1} parent=47 // pred_check_branch
          %2960 = sbr.rel (%p2958) target = $region56
        $region55: #{patch_embedding_proj.1} parent=47 // pred_region
          %s2961 = smul.u32 32, %s19
        $region56: #{patch_embedding_proj.1} parent=47 // pred_fallthru
          _
      $region48: #{patch_embedding_proj.1} parent=5 // pred_fallthru
        _
      %p2962 = scmp.le.s32.totalorder 2, %s14
      // Predicated region
      $region57: #{patch_embedding_proj.1} parent=5 // pred_check
        %p2963 = pneg %p2962
      $region58: #{patch_embedding_proj.1} parent=5 // pred_check_branch
        %2965 = sbr.rel (%p2963) target = $region60
      $region59: #{patch_embedding_proj.1} parent=5 // pred_region
        %s2966 = ssub.s32 %s14, 2
        // Predicated region
        $region61: #{patch_embedding_proj.1} parent=59 // pred_check
          %p2967 = pneg %p195
        $region62: #{patch_embedding_proj.1} parent=59 // pred_check_branch
          %2969 = sbr.rel (%p2967) target = $region64
        $region63: #{patch_embedding_proj.1} parent=59 // pred_region
          %s2970 = smul.u32 32, %s20
          %p2971 = scmp.lt.s32.totalorder %s2970, 63
          %s2972 = scalar_select %p2971, %s2970, 63
          %s2973 = smul.addr %s2972, 8
          %s2974 = scalar_lea.vmem %s7, %s2973
        $region64: #{patch_embedding_proj.1} parent=59 // pred_fallthru
          _
      $region60: #{patch_embedding_proj.1} parent=5 // pred_fallthru
        _
    $region6: #{patch_embedding_proj.1} parent=1 // loop_footer
      %s18 = sadd.s32 1, %s14
    $region7: #{patch_embedding_proj.1} parent=1 // loop_footer_branch
      %13 = sbr.rel target = $region3
    $region8: #{patch_embedding_proj.1} parent=1 // loop_exit
      _
    %2975 = vsyncpa [#allocation3], 1
    %s2976 = scalar_lea.sflag [#allocation3], 1
    %2977 = vsyncpa %s2976, 1

</llo_original>
